<compile_context>
chip_gen: v6e
topology: v6e:2x2x1
jax: 0.10.0
libtpu: 0.0.40
codegen_flags: <defaults>
</compile_context>

<pallas_src>
import math
from functools import partial

import jax
import jax.numpy as jnp
from jax.experimental import pallas as pl
from jax.experimental.pallas import tpu as pltpu

LN_EPS = 1e-5  # torch.nn.LayerNorm default


# ---------------------------------------------------------------------------
# in-kernel helpers (all f32 elementwise math)
# ---------------------------------------------------------------------------
def _layer_norm(x, gamma, beta):
    # x: (N, D); gamma/beta: (1, D). Biased variance, like torch.nn.LayerNorm.
    mean = jnp.mean(x, axis=-1, keepdims=True)
    var = jnp.mean((x - mean) ** 2, axis=-1, keepdims=True)
    return (x - mean) * jax.lax.rsqrt(var + LN_EPS) * gamma + beta


def _gelu(x):
    # tanh approximation of GELU (see TODO above).
    c = math.sqrt(2.0 / math.pi)
    return 0.5 * x * (1.0 + jnp.tanh(c * (x + 0.044715 * x * x * x)))


def _bf16(x):
    return x.astype(jnp.bfloat16)


# ---------------------------------------------------------------------------
# fused kernel: one grid step = (batch element b, layer l)
# ---------------------------------------------------------------------------
def layer_kernel(x_ref,
                 ag_ref, ab_ref, wqkv_ref, wo_ref, bo_ref,
                 fg_ref, fb_ref, w1_ref, b1_ref, w2_ref, b2_ref,
                 o_ref,
                 *, n_heads, dim_head, n_valid):
    l = pl.program_id(1)

    # layer 0: seed the resident VMEM carry (o_ref) from the HBM input block.
    @pl.when(l == 0)
    def _():
        o_ref[...] = x_ref[...]

    x = o_ref[0]                                   # (Np, D) f32, resident across layers
    n_pad = x.shape[0]
    inner = n_heads * dim_head
    scale = 1.0 / math.sqrt(dim_head)

    # ------------- PreNorm + Attention + residual -------------
    xn = _layer_norm(x, ag_ref[0], ab_ref[0])
    # single fused QKV GEMM (bf16 operands, f32 accumulation) — keeps the MXU fully fed
    qkv = jnp.dot(_bf16(xn), wqkv_ref[0], preferred_element_type=jnp.float32)   # (Np, 3*inner) f32

    # scale q in f32 BEFORE the bf16 cast (Np*inner muls instead of H*Np^2).
    q = qkv[:, :inner] * scale
    k = qkv[:, inner:2 * inner]
    v = qkv[:, 2 * inner:]

    def split_heads(t):                            # (Np, inner) f32 -> (H, Np, dh) bf16
        return jnp.stack(
            [_bf16(t[:, h * dim_head:(h + 1) * dim_head]) for h in range(n_heads)],
            axis=0)

    qh, kh, vh = split_heads(q), split_heads(k), split_heads(v)

    # q @ k^T for all heads at once, contracting the last dims (no transpose materialized).
    dots = jnp.einsum("hqd,hkd->hqk", qh, kh,
                      preferred_element_type=jnp.float32)          # (H, Np, Np) f32

    if n_valid < n_pad:                            # static branch: mask padded key columns
        # mask built ONCE per grid step, broadcast over heads/query rows
        key_ok = jax.lax.broadcasted_iota(jnp.int32, (1, n_pad), 1) < n_valid
        dots = jnp.where(key_ok[None, :, :], dots, jnp.float32(-1e30))

    dots = dots - jnp.max(dots, axis=-1, keepdims=True)
    e = jnp.exp(dots)                              # f32 softmax math
    attn = e * pl.reciprocal(jnp.sum(e, axis=-1, keepdims=True), approx=True)

    out = jnp.einsum("hqk,hkd->hqd", _bf16(attn), vh,
                     preferred_element_type=jnp.float32)            # (H, Np, dh) f32

    # one full-K output projection:  concat(out_h) @ Wo   (K = inner)
    heads = jnp.concatenate([out[h] for h in range(n_heads)], axis=-1)   # (Np, inner) f32
    proj = jnp.dot(_bf16(heads), wo_ref[0], preferred_element_type=jnp.float32)
    x = x + proj + bo_ref[0]                       # to_out bias + residual (f32)

    # ------------- PreNorm + FeedForward + residual -------------
    xn = _layer_norm(x, fg_ref[0], fb_ref[0])
    h1 = jnp.dot(_bf16(xn), w1_ref[0], preferred_element_type=jnp.float32) + b1_ref[0]
    h1 = _gelu(h1)
    y = jnp.dot(_bf16(h1), w2_ref[0], preferred_element_type=jnp.float32) + b2_ref[0]
    o_ref[0] = x + y                               # residual (f32) — carried to the next layer


# ---------------------------------------------------------------------------
# wrappers
# ---------------------------------------------------------------------------
def _vmem_limit_bytes():
    # ~80% of physical per-core VMEM: headroom for Mosaic internal scratch / double buffers.
    # (v5e/v6e: ~100 MiB of 128; v7x: ~51 MiB of 64 — never pin the full 64 MiB there.)
    try:
        cap = pltpu.get_tpu_info().vmem_capacity_bytes
        return max(32 * 1024 * 1024, min(int(0.8 * cap), 100 * 1024 * 1024))
    except Exception:
        return 48 * 1024 * 1024


def stack_params(layers):
    """Stack per-layer params along a leading depth axis; cast GEMM weights to bf16 ONCE."""
    attn, ff = zip(*layers)

    def stk(ps, key, dtype=None):
        a = jnp.stack([p[key] for p in ps], axis=0)
        return a.astype(dtype) if dtype is not None else a

    return dict(
        ag=stk(attn, "ln_g"), ab=stk(attn, "ln_b"),
        wqkv=stk(attn, "wqkv", jnp.bfloat16),
        wo=stk(attn, "wo", jnp.bfloat16),
        bo=stk(attn, "bo"),
        fg=stk(ff, "ln_g"), fb=stk(ff, "ln_b"),
        w1=stk(ff, "w1", jnp.bfloat16), b1=stk(ff, "b1"),
        w2=stk(ff, "w2", jnp.bfloat16), b2=stk(ff, "b2"),
    )


def transformer_forward(x, params, *, n_heads, dim_head):
    B, N, D = x.shape
    n_pad = -(-N // 8) * 8                         # pad sequence to a sublane multiple
    if n_pad != N:
        x = jnp.pad(x, ((0, 0), (0, n_pad - N), (0, 0)))

    depth = params["wqkv"].shape[0]
    inner = n_heads * dim_head
    F = params["w1"].shape[-1]

    kernel = partial(layer_kernel, n_heads=n_heads, dim_head=dim_head, n_valid=N)

    def wspec(per_layer_shape):
        # stacked weight (depth, *per_layer_shape): block = one layer's full tensor, indexed by l
        nd = len(per_layer_shape)
        return pl.BlockSpec((1,) + per_layer_shape,
                            lambda b, l, _nd=nd: (l,) + (0,) * _nd)

    act_spec = pl.BlockSpec((1, n_pad, D), lambda b, l: (b, 0, 0))   # constant over l

    out = pl.pallas_call(
        kernel,
        out_shape=jax.ShapeDtypeStruct((B, n_pad, D), x.dtype),
        grid_spec=pltpu.PrefetchScalarGridSpec(
            num_scalar_prefetch=0,
            grid=(B, depth),                       # b outer (parallel), layer inner (carry)
            in_specs=[
                act_spec,                          # activations (read once per b, at l==0)
                wspec((1, D)),                     # attn LayerNorm gamma (f32)
                wspec((1, D)),                     # attn LayerNorm beta  (f32)
                wspec((D, 3 * inner)),             # to_qkv weight (bf16, no bias)
                wspec((inner, D)),                 # to_out weight (bf16)
                wspec((1, D)),                     # to_out bias (f32)
                wspec((1, D)),                     # ff LayerNorm gamma (f32)
                wspec((1, D)),                     # ff LayerNorm beta  (f32)
                wspec((D, F)),                     # Linear1 weight (bf16)
                wspec((1, F)),                     # Linear1 bias (f32)
                wspec((F, D)),                     # Linear2 weight (bf16)
                wspec((1, D)),                     # Linear2 bias (f32)
            ],
            out_specs=act_spec,                    # same block across l -> resident VMEM carry
        ),
        compiler_params=pltpu.CompilerParams(
            dimension_semantics=("parallel", "arbitrary"),
            vmem_limit_bytes=_vmem_limit_bytes(),
        ),
    )(x,
      params["ag"], params["ab"], params["wqkv"], params["wo"], params["bo"],
      params["fg"], params["fb"], params["w1"], params["b1"], params["w2"], params["b2"])

    if n_pad != N:
        out = out[:, :N, :]
    return out


# ---------------------------------------------------------------------------
# deterministic parameter init (PyTorch Linear-style uniform(+/- 1/sqrt(fan_in)))
# ---------------------------------------------------------------------------
def init_params(key, d_model, depth, n_heads, dim_head, ffwd_dim):
    inner = n_heads * dim_head

    def unif(k, shape, fan_in):
        bound = 1.0 / math.sqrt(fan_in)
        return jax.random.uniform(k, shape, jnp.float32, -bound, bound)

    layers = []
    for _ in range(depth):
        key, *ks = jax.random.split(key, 8)
        attn_p = dict(
            ln_g=jnp.ones((1, d_model), jnp.float32),
            ln_b=jnp.zeros((1, d_model), jnp.float32),
            wqkv=unif(ks[0], (d_model, 3 * inner), d_model),
            wo=unif(ks[1], (inner, d_model), inner),
            bo=unif(ks[2], (1, d_model), inner),
        )
        ff_p = dict(
            ln_g=jnp.ones((1, d_model), jnp.float32),
            ln_b=jnp.zeros((1, d_model), jnp.float32),
            w1=unif(ks[3], (d_model, ffwd_dim), d_model),
            b1=unif(ks[4], (1, ffwd_dim), d_model),
            w2=unif(ks[5], (ffwd_dim, d_model), ffwd_dim),
            b2=unif(ks[6], (1, d_model), ffwd_dim),
        )
        layers.append((attn_p, ff_p))
    return layers


# ---------------------------------------------------------------------------
# pure-JAX reference (mirrors bf16 matmul operands so the comparison stays tight)
# ---------------------------------------------------------------------------
def reference_forward(x, layers, *, n_heads, dim_head):
    def ln(v, g, b):
        m = jnp.mean(v, -1, keepdims=True)
        var = jnp.mean((v - m) ** 2, -1, keepdims=True)
        return (v - m) * jax.lax.rsqrt(var + LN_EPS) * g + b

    def mm(a, w):
        return jnp.dot(a.astype(jnp.bfloat16), w.astype(jnp.bfloat16),
                       preferred_element_type=jnp.float32)

    scale = 1.0 / math.sqrt(dim_head)
    for attn_p, ff_p in layers:
        B, N, D = x.shape
        xn = ln(x, attn_p["ln_g"], attn_p["ln_b"])
        qkv = mm(xn, attn_p["wqkv"])
        q, k, v = jnp.split(qkv, 3, axis=-1)

        def to_heads(t):
            return t.reshape(B, N, n_heads, dim_head).transpose(0, 2, 1, 3)

        q, k, v = map(to_heads, (q, k, v))
        dots = jnp.einsum("bhqd,bhkd->bhqk",
                          q.astype(jnp.bfloat16), k.astype(jnp.bfloat16),
                          preferred_element_type=jnp.float32) * scale
        attn = jax.nn.softmax(dots, axis=-1)
        out = jnp.einsum("bhqk,bhkd->bhqd",
                         attn.astype(jnp.bfloat16), v.astype(jnp.bfloat16),
                         preferred_element_type=jnp.float32)
        out = out.transpose(0, 2, 1, 3).reshape(B, N, n_heads * dim_head)
        x = x + mm(out, attn_p["wo"]) + attn_p["bo"]

        xn = ln(x, ff_p["ln_g"], ff_p["ln_b"])
        h = _gelu(mm(xn, ff_p["w1"]) + ff_p["b1"])
        x = x + mm(h, ff_p["w2"]) + ff_p["b2"]
    return x


if __name__ == "__main__":
    # small, d_model-consistent shapes
    B, N = 2, 8
    d_model, depth, n_heads, dim_head, ffwd_dim = 32, 2, 4, 8, 64

    key = jax.random.PRNGKey(0)
    kx, kp, kx2 = jax.random.split(key, 3)
    x = jax.random.normal(kx, (B, N, d_model), jnp.float32)
    layers = init_params(kp, d_model, depth, n_heads, dim_head, ffwd_dim)
    packed = stack_params(layers)   # stacked along depth + bf16 GEMM weights, done ONCE

    fwd = jax.jit(partial(transformer_forward, n_heads=n_heads, dim_head=dim_head))

    out = jax.block_until_ready(fwd(x, packed))
    ref = reference_forward(x, layers, n_heads=n_heads, dim_head=dim_head)
    assert out.shape == (B, N, d_model)
    assert jnp.allclose(out, ref, atol=2e-2, rtol=2e-2), "mismatch vs JAX reference"

    # non-multiple-of-8 sequence exercises the pad + masked-softmax path
    N2 = 12
    x2 = jax.random.normal(kx2, (B, N2, d_model), jnp.float32)
    out2 = jax.block_until_ready(fwd(x2, packed))
    ref2 = reference_forward(x2, layers, n_heads=n_heads, dim_head=dim_head)
    assert out2.shape == (B, N2, d_model)
    assert jnp.allclose(out2, ref2, atol=2e-2, rtol=2e-2), "mismatch (padded seq) vs JAX reference"

    print("KERNEL_OK")
</pallas_src>

<mosaic_0001>
module attributes {stable_mosaic.version = 11 : i64} {
  func.func @layer_kernel(%arg0: i32, %arg1: i32, %arg2: memref<1x8x32xf32, #tpu.memory_space<vmem>>, %arg3: memref<1x1x32xf32, #tpu.memory_space<vmem>>, %arg4: memref<1x1x32xf32, #tpu.memory_space<vmem>>, %arg5: memref<1x32x96xbf16, #tpu.memory_space<vmem>>, %arg6: memref<1x32x32xbf16, #tpu.memory_space<vmem>>, %arg7: memref<1x1x32xf32, #tpu.memory_space<vmem>>, %arg8: memref<1x1x32xf32, #tpu.memory_space<vmem>>, %arg9: memref<1x1x32xf32, #tpu.memory_space<vmem>>, %arg10: memref<1x32x64xbf16, #tpu.memory_space<vmem>>, %arg11: memref<1x1x64xf32, #tpu.memory_space<vmem>>, %arg12: memref<1x64x32xbf16, #tpu.memory_space<vmem>>, %arg13: memref<1x1x32xf32, #tpu.memory_space<vmem>>, %arg14: memref<1x8x32xf32, #tpu.memory_space<vmem>>) attributes {dimension_semantics = [#tpu.dimension_semantics<parallel>, #tpu.dimension_semantics<arbitrary>], iteration_bounds = array<i64: 2, 2>, scalar_prefetch = 0 : i64, scratch_operands = 0 : i64, tpu.core_type = #tpu.core_type<tc>, window_params = [{transform_indices = @transform_0, window_bounds = array<i64: 1, 8, 32>}, {transform_indices = @transform_1, window_bounds = array<i64: 1, 1, 32>}, {transform_indices = @transform_2, window_bounds = array<i64: 1, 1, 32>}, {transform_indices = @transform_3, window_bounds = array<i64: 1, 32, 96>}, {transform_indices = @transform_4, window_bounds = array<i64: 1, 32, 32>}, {transform_indices = @transform_5, window_bounds = array<i64: 1, 1, 32>}, {transform_indices = @transform_6, window_bounds = array<i64: 1, 1, 32>}, {transform_indices = @transform_7, window_bounds = array<i64: 1, 1, 32>}, {transform_indices = @transform_8, window_bounds = array<i64: 1, 32, 64>}, {transform_indices = @transform_9, window_bounds = array<i64: 1, 1, 64>}, {transform_indices = @transform_10, window_bounds = array<i64: 1, 64, 32>}, {transform_indices = @transform_11, window_bounds = array<i64: 1, 1, 32>}, {transform_indices = @transform_12, window_bounds = array<i64: 1, 8, 32>}]} {
    %c0_i32 = arith.constant 0 : i32
    %0 = arith.cmpi eq, %arg1, %c0_i32 : i32
    %1 = arith.extui %0 : i1 to i32
    %c0_i32_0 = arith.constant 0 : i32
    %2 = arith.cmpi ne, %1, %c0_i32_0 : i32
    scf.if %2 {
      %c0_61 = arith.constant 0 : index
      %c0_62 = arith.constant 0 : index
      %c0_63 = arith.constant 0 : index
      %169 = vector.load %arg2[%c0_61, %c0_62, %c0_63] : memref<1x8x32xf32, #tpu.memory_space<vmem>>, vector<1x8x32xf32>
      %c0_64 = arith.constant 0 : index
      %c0_65 = arith.constant 0 : index
      %c0_66 = arith.constant 0 : index
      %170 = vector.load %arg14[%c0_64, %c0_65, %c0_66] : memref<1x8x32xf32, #tpu.memory_space<vmem>>, vector<1x8x32xf32>
      tpu.vector_store %arg14[%c0_64, %c0_65, %c0_66], %169 {strides = array<i32>} : memref<1x8x32xf32, #tpu.memory_space<vmem>>, vector<1x8x32xf32>,
    } else {
    }
    %c0 = arith.constant 0 : index
    %c0_1 = arith.constant 0 : index
    %c0_2 = arith.constant 0 : index
    %3 = vector.load %arg14[%c0, %c0_1, %c0_2] : memref<1x8x32xf32, #tpu.memory_space<vmem>>, vector<1x8x32xf32>
    %4 = vector.shape_cast %3 : vector<1x8x32xf32> to vector<8x32xf32>
    %c0_3 = arith.constant 0 : index
    %c0_4 = arith.constant 0 : index
    %c0_5 = arith.constant 0 : index
    %5 = vector.load %arg3[%c0_3, %c0_4, %c0_5] : memref<1x1x32xf32, #tpu.memory_space<vmem>>, vector<1x1x32xf32>
    %6 = vector.shape_cast %5 : vector<1x1x32xf32> to vector<1x32xf32>
    %c0_6 = arith.constant 0 : index
    %c0_7 = arith.constant 0 : index
    %c0_8 = arith.constant 0 : index
    %7 = vector.load %arg4[%c0_6, %c0_7, %c0_8] : memref<1x1x32xf32, #tpu.memory_space<vmem>>, vector<1x1x32xf32>
    %8 = vector.shape_cast %7 : vector<1x1x32xf32> to vector<1x32xf32>
    %cst = arith.constant dense<0.000000e+00> : vector<8xf32>
    %9 = vector.multi_reduction <add>, %4, %cst [1] : vector<8x32xf32> to vector<8xf32>
    %10 = vector.shape_cast %9 : vector<8xf32> to vector<8x1xf32>
    %cst_9 = arith.constant 3.200000e+01 : f32
    %11 = vector.broadcast %cst_9 : f32 to vector<8x1xf32>
    %12 = arith.divf %10, %11 : vector<8x1xf32>
    %13 = vector.broadcast %12 : vector<8x1xf32> to vector<8x32xf32>
    %14 = arith.subf %4, %13 : vector<8x32xf32>
    %15 = arith.mulf %14, %14 : vector<8x32xf32>
    %cst_10 = arith.constant dense<0.000000e+00> : vector<8xf32>
    %16 = vector.multi_reduction <add>, %15, %cst_10 [1] : vector<8x32xf32> to vector<8xf32>
    %17 = vector.shape_cast %16 : vector<8xf32> to vector<8x1xf32>
    %cst_11 = arith.constant 3.200000e+01 : f32
    %18 = vector.broadcast %cst_11 : f32 to vector<8x1xf32>
    %19 = arith.divf %17, %18 : vector<8x1xf32>
    %20 = vector.broadcast %12 : vector<8x1xf32> to vector<8x32xf32>
    %21 = arith.subf %4, %20 : vector<8x32xf32>
    %cst_12 = arith.constant 9.99999974E-6 : f32
    %22 = vector.broadcast %cst_12 : f32 to vector<8x1xf32>
    %23 = arith.addf %19, %22 : vector<8x1xf32>
    %24 = math.rsqrt %23 : vector<8x1xf32>
    %25 = vector.broadcast %24 : vector<8x1xf32> to vector<8x32xf32>
    %26 = arith.mulf %21, %25 : vector<8x32xf32>
    %27 = vector.broadcast %6 : vector<1x32xf32> to vector<8x32xf32>
    %28 = arith.mulf %26, %27 : vector<8x32xf32>
    %29 = vector.broadcast %8 : vector<1x32xf32> to vector<8x32xf32>
    %30 = arith.addf %28, %29 : vector<8x32xf32>
    %31 = arith.truncf %30 : vector<8x32xf32> to vector<8x32xbf16>
    %c0_13 = arith.constant 0 : index
    %c0_14 = arith.constant 0 : index
    %c0_15 = arith.constant 0 : index
    %32 = vector.load %arg5[%c0_13, %c0_14, %c0_15] : memref<1x32x96xbf16, #tpu.memory_space<vmem>>, vector<1x32x96xbf16>
    %33 = vector.shape_cast %32 : vector<1x32x96xbf16> to vector<32x96xbf16>
    %cst_16 = arith.constant dense<0.000000e+00> : vector<8x96xf32>
    %34 = tpu.matmul %31, %33, %cst_16 {dimension_numbers = #tpu.dot_dimension_numbers<[1], [0], [0], [1], [0, 0, 1, 1], [], []>} : vector<8x32xbf16>, vector<32x96xbf16>, vector<8x96xf32> -> vector<8x96xf32>
    %35 = vector.extract_strided_slice %34 {offsets = [0, 0], sizes = [8, 32], strides = [1, 1]} : vector<8x96xf32> to vector<8x32xf32>
    %cst_17 = arith.constant 0.353553385 : f32
    %36 = vector.broadcast %cst_17 : f32 to vector<8x32xf32>
    %37 = arith.mulf %35, %36 : vector<8x32xf32>
    %38 = vector.extract_strided_slice %34 {offsets = [0, 32], sizes = [8, 32], strides = [1, 1]} : vector<8x96xf32> to vector<8x32xf32>
    %39 = vector.extract_strided_slice %34 {offsets = [0, 64], sizes = [8, 32], strides = [1, 1]} : vector<8x96xf32> to vector<8x32xf32>
    %40 = vector.extract_strided_slice %37 {offsets = [0, 0], sizes = [8, 8], strides = [1, 1]} : vector<8x32xf32> to vector<8x8xf32>
    %41 = arith.truncf %40 : vector<8x8xf32> to vector<8x8xbf16>
    %42 = vector.extract_strided_slice %37 {offsets = [0, 8], sizes = [8, 8], strides = [1, 1]} : vector<8x32xf32> to vector<8x8xf32>
    %43 = arith.truncf %42 : vector<8x8xf32> to vector<8x8xbf16>
    %44 = vector.extract_strided_slice %37 {offsets = [0, 16], sizes = [8, 8], strides = [1, 1]} : vector<8x32xf32> to vector<8x8xf32>
    %45 = arith.truncf %44 : vector<8x8xf32> to vector<8x8xbf16>
    %46 = vector.extract_strided_slice %37 {offsets = [0, 24], sizes = [8, 8], strides = [1, 1]} : vector<8x32xf32> to vector<8x8xf32>
    %47 = arith.truncf %46 : vector<8x8xf32> to vector<8x8xbf16>
    %48 = vector.shape_cast %41 : vector<8x8xbf16> to vector<1x8x8xbf16>
    %49 = vector.shape_cast %43 : vector<8x8xbf16> to vector<1x8x8xbf16>
    %50 = vector.shape_cast %45 : vector<8x8xbf16> to vector<1x8x8xbf16>
    %51 = vector.shape_cast %47 : vector<8x8xbf16> to vector<1x8x8xbf16>
    %52 = tpu.concatenate %48, %49, %50, %51 in 0 : vector<1x8x8xbf16>, vector<1x8x8xbf16>, vector<1x8x8xbf16>, vector<1x8x8xbf16> -> vector<4x8x8xbf16>
    %53 = vector.extract_strided_slice %38 {offsets = [0, 0], sizes = [8, 8], strides = [1, 1]} : vector<8x32xf32> to vector<8x8xf32>
    %54 = arith.truncf %53 : vector<8x8xf32> to vector<8x8xbf16>
    %55 = vector.extract_strided_slice %38 {offsets = [0, 8], sizes = [8, 8], strides = [1, 1]} : vector<8x32xf32> to vector<8x8xf32>
    %56 = arith.truncf %55 : vector<8x8xf32> to vector<8x8xbf16>
    %57 = vector.extract_strided_slice %38 {offsets = [0, 16], sizes = [8, 8], strides = [1, 1]} : vector<8x32xf32> to vector<8x8xf32>
    %58 = arith.truncf %57 : vector<8x8xf32> to vector<8x8xbf16>
    %59 = vector.extract_strided_slice %38 {offsets = [0, 24], sizes = [8, 8], strides = [1, 1]} : vector<8x32xf32> to vector<8x8xf32>
    %60 = arith.truncf %59 : vector<8x8xf32> to vector<8x8xbf16>
    %61 = vector.shape_cast %54 : vector<8x8xbf16> to vector<1x8x8xbf16>
    %62 = vector.shape_cast %56 : vector<8x8xbf16> to vector<1x8x8xbf16>
    %63 = vector.shape_cast %58 : vector<8x8xbf16> to vector<1x8x8xbf16>
    %64 = vector.shape_cast %60 : vector<8x8xbf16> to vector<1x8x8xbf16>
    %65 = tpu.concatenate %61, %62, %63, %64 in 0 : vector<1x8x8xbf16>, vector<1x8x8xbf16>, vector<1x8x8xbf16>, vector<1x8x8xbf16> -> vector<4x8x8xbf16>
    %66 = vector.extract_strided_slice %39 {offsets = [0, 0], sizes = [8, 8], strides = [1, 1]} : vector<8x32xf32> to vector<8x8xf32>
    %67 = arith.truncf %66 : vector<8x8xf32> to vector<8x8xbf16>
    %68 = vector.extract_strided_slice %39 {offsets = [0, 8], sizes = [8, 8], strides = [1, 1]} : vector<8x32xf32> to vector<8x8xf32>
    %69 = arith.truncf %68 : vector<8x8xf32> to vector<8x8xbf16>
    %70 = vector.extract_strided_slice %39 {offsets = [0, 16], sizes = [8, 8], strides = [1, 1]} : vector<8x32xf32> to vector<8x8xf32>
    %71 = arith.truncf %70 : vector<8x8xf32> to vector<8x8xbf16>
    %72 = vector.extract_strided_slice %39 {offsets = [0, 24], sizes = [8, 8], strides = [1, 1]} : vector<8x32xf32> to vector<8x8xf32>
    %73 = arith.truncf %72 : vector<8x8xf32> to vector<8x8xbf16>
    %74 = vector.shape_cast %67 : vector<8x8xbf16> to vector<1x8x8xbf16>
    %75 = vector.shape_cast %69 : vector<8x8xbf16> to vector<1x8x8xbf16>
    %76 = vector.shape_cast %71 : vector<8x8xbf16> to vector<1x8x8xbf16>
    %77 = vector.shape_cast %73 : vector<8x8xbf16> to vector<1x8x8xbf16>
    %78 = tpu.concatenate %74, %75, %76, %77 in 0 : vector<1x8x8xbf16>, vector<1x8x8xbf16>, vector<1x8x8xbf16>, vector<1x8x8xbf16> -> vector<4x8x8xbf16>
    "tpu.trace_start"() <{level = 10 : i32, message = "hqd,hkd->hqk"}> : () -> ()
    %cst_18 = arith.constant dense<0.000000e+00> : vector<4x8x8xf32>
    %79 = tpu.matmul %52, %65, %cst_18 {dimension_numbers = #tpu.dot_dimension_numbers<[2], [2], [1], [1], [0, 0, 0, 1, 1, 1], [0], [0]>} : vector<4x8x8xbf16>, vector<4x8x8xbf16>, vector<4x8x8xf32> -> vector<4x8x8xf32>
    "tpu.trace_stop"() : () -> ()
    %cst_19 = arith.constant dense<0xFF800000> : vector<4x8xf32>
    %80 = vector.multi_reduction <maximumf>, %79, %cst_19 [2] : vector<4x8x8xf32> to vector<4x8xf32>
    %81 = vector.shape_cast %80 : vector<4x8xf32> to vector<4x8x1xf32>
    %82 = vector.broadcast %81 : vector<4x8x1xf32> to vector<4x8x8xf32>
    %83 = arith.subf %79, %82 : vector<4x8x8xf32>
    %84 = math.exp %83 : vector<4x8x8xf32>
    %cst_20 = arith.constant dense<0.000000e+00> : vector<4x8xf32>
    %85 = vector.multi_reduction <add>, %84, %cst_20 [2] : vector<4x8x8xf32> to vector<4x8xf32>
    %86 = vector.shape_cast %85 : vector<4x8xf32> to vector<4x8x1xf32>
    %87 = tpu.reciprocal %86 {approx = true} : vector<4x8x1xf32> -> vector<4x8x1xf32>
    %88 = vector.broadcast %87 : vector<4x8x1xf32> to vector<4x8x8xf32>
    %89 = arith.mulf %84, %88 : vector<4x8x8xf32>
    %90 = arith.truncf %89 : vector<4x8x8xf32> to vector<4x8x8xbf16>
    "tpu.trace_start"() <{level = 10 : i32, message = "hqk,hkd->hqd"}> : () -> ()
    %cst_21 = arith.constant dense<0.000000e+00> : vector<4x8x8xf32>
    %91 = tpu.matmul %90, %78, %cst_21 {dimension_numbers = #tpu.dot_dimension_numbers<[2], [1], [1], [2], [0, 0, 0, 1, 1, 2], [0], [0]>} : vector<4x8x8xbf16>, vector<4x8x8xbf16>, vector<4x8x8xf32> -> vector<4x8x8xf32>
    "tpu.trace_stop"() : () -> ()
    %92 = vector.extract_strided_slice %91 {offsets = [0, 0, 0], sizes = [1, 8, 8], strides = [1, 1, 1]} : vector<4x8x8xf32> to vector<1x8x8xf32>
    %93 = vector.shape_cast %92 : vector<1x8x8xf32> to vector<8x8xf32>
    %94 = vector.extract_strided_slice %91 {offsets = [1, 0, 0], sizes = [1, 8, 8], strides = [1, 1, 1]} : vector<4x8x8xf32> to vector<1x8x8xf32>
    %95 = vector.shape_cast %94 : vector<1x8x8xf32> to vector<8x8xf32>
    %96 = vector.extract_strided_slice %91 {offsets = [2, 0, 0], sizes = [1, 8, 8], strides = [1, 1, 1]} : vector<4x8x8xf32> to vector<1x8x8xf32>
    %97 = vector.shape_cast %96 : vector<1x8x8xf32> to vector<8x8xf32>
    %98 = vector.extract_strided_slice %91 {offsets = [3, 0, 0], sizes = [1, 8, 8], strides = [1, 1, 1]} : vector<4x8x8xf32> to vector<1x8x8xf32>
    %99 = vector.shape_cast %98 : vector<1x8x8xf32> to vector<8x8xf32>
    %100 = tpu.concatenate %93, %95, %97, %99 in 1 : vector<8x8xf32>, vector<8x8xf32>, vector<8x8xf32>, vector<8x8xf32> -> vector<8x32xf32>
    %101 = arith.truncf %100 : vector<8x32xf32> to vector<8x32xbf16>
    %c0_22 = arith.constant 0 : index
    %c0_23 = arith.constant 0 : index
    %c0_24 = arith.constant 0 : index
    %102 = vector.load %arg6[%c0_22, %c0_23, %c0_24] : memref<1x32x32xbf16, #tpu.memory_space<vmem>>, vector<1x32x32xbf16>
    %103 = vector.shape_cast %102 : vector<1x32x32xbf16> to vector<32x32xbf16>
    %cst_25 = arith.constant dense<0.000000e+00> : vector<8x32xf32>
    %104 = tpu.matmul %101, %103, %cst_25 {dimension_numbers = #tpu.dot_dimension_numbers<[1], [0], [0], [1], [0, 0, 1, 1], [], []>} : vector<8x32xbf16>, vector<32x32xbf16>, vector<8x32xf32> -> vector<8x32xf32>
    %105 = arith.addf %4, %104 : vector<8x32xf32>
    %c0_26 = arith.constant 0 : index
    %c0_27 = arith.constant 0 : index
    %c0_28 = arith.constant 0 : index
    %106 = vector.load %arg7[%c0_26, %c0_27, %c0_28] : memref<1x1x32xf32, #tpu.memory_space<vmem>>, vector<1x1x32xf32>
    %107 = vector.shape_cast %106 : vector<1x1x32xf32> to vector<1x32xf32>
    %108 = vector.broadcast %107 : vector<1x32xf32> to vector<8x32xf32>
    %109 = arith.addf %105, %108 : vector<8x32xf32>
    %c0_29 = arith.constant 0 : index
    %c0_30 = arith.constant 0 : index
    %c0_31 = arith.constant 0 : index
    %110 = vector.load %arg8[%c0_29, %c0_30, %c0_31] : memref<1x1x32xf32, #tpu.memory_space<vmem>>, vector<1x1x32xf32>
    %111 = vector.shape_cast %110 : vector<1x1x32xf32> to vector<1x32xf32>
    %c0_32 = arith.constant 0 : index
    %c0_33 = arith.constant 0 : index
    %c0_34 = arith.constant 0 : index
    %112 = vector.load %arg9[%c0_32, %c0_33, %c0_34] : memref<1x1x32xf32, #tpu.memory_space<vmem>>, vector<1x1x32xf32>
    %113 = vector.shape_cast %112 : vector<1x1x32xf32> to vector<1x32xf32>
    %cst_35 = arith.constant dense<0.000000e+00> : vector<8xf32>
    %114 = vector.multi_reduction <add>, %109, %cst_35 [1] : vector<8x32xf32> to vector<8xf32>
    %115 = vector.shape_cast %114 : vector<8xf32> to vector<8x1xf32>
    %cst_36 = arith.constant 3.200000e+01 : f32
    %116 = vector.broadcast %cst_36 : f32 to vector<8x1xf32>
    %117 = arith.divf %115, %116 : vector<8x1xf32>
    %118 = vector.broadcast %117 : vector<8x1xf32> to vector<8x32xf32>
    %119 = arith.subf %109, %118 : vector<8x32xf32>
    %120 = arith.mulf %119, %119 : vector<8x32xf32>
    %cst_37 = arith.constant dense<0.000000e+00> : vector<8xf32>
    %121 = vector.multi_reduction <add>, %120, %cst_37 [1] : vector<8x32xf32> to vector<8xf32>
    %122 = vector.shape_cast %121 : vector<8xf32> to vector<8x1xf32>
    %cst_38 = arith.constant 3.200000e+01 : f32
    %123 = vector.broadcast %cst_38 : f32 to vector<8x1xf32>
    %124 = arith.divf %122, %123 : vector<8x1xf32>
    %125 = vector.broadcast %117 : vector<8x1xf32> to vector<8x32xf32>
    %126 = arith.subf %109, %125 : vector<8x32xf32>
    %cst_39 = arith.constant 9.99999974E-6 : f32
    %127 = vector.broadcast %cst_39 : f32 to vector<8x1xf32>
    %128 = arith.addf %124, %127 : vector<8x1xf32>
    %129 = math.rsqrt %128 : vector<8x1xf32>
    %130 = vector.broadcast %129 : vector<8x1xf32> to vector<8x32xf32>
    %131 = arith.mulf %126, %130 : vector<8x32xf32>
    %132 = vector.broadcast %111 : vector<1x32xf32> to vector<8x32xf32>
    %133 = arith.mulf %131, %132 : vector<8x32xf32>
    %134 = vector.broadcast %113 : vector<1x32xf32> to vector<8x32xf32>
    %135 = arith.addf %133, %134 : vector<8x32xf32>
    %136 = arith.truncf %135 : vector<8x32xf32> to vector<8x32xbf16>
    %c0_40 = arith.constant 0 : index
    %c0_41 = arith.constant 0 : index
    %c0_42 = arith.constant 0 : index
    %137 = vector.load %arg10[%c0_40, %c0_41, %c0_42] : memref<1x32x64xbf16, #tpu.memory_space<vmem>>, vector<1x32x64xbf16>
    %138 = vector.shape_cast %137 : vector<1x32x64xbf16> to vector<32x64xbf16>
    %cst_43 = arith.constant dense<0.000000e+00> : vector<8x64xf32>
    %139 = tpu.matmul %136, %138, %cst_43 {dimension_numbers = #tpu.dot_dimension_numbers<[1], [0], [0], [1], [0, 0, 1, 1], [], []>} : vector<8x32xbf16>, vector<32x64xbf16>, vector<8x64xf32> -> vector<8x64xf32>
    %c0_44 = arith.constant 0 : index
    %c0_45 = arith.constant 0 : index
    %c0_46 = arith.constant 0 : index
    %140 = vector.load %arg11[%c0_44, %c0_45, %c0_46] : memref<1x1x64xf32, #tpu.memory_space<vmem>>, vector<1x1x64xf32>
    %141 = vector.shape_cast %140 : vector<1x1x64xf32> to vector<1x64xf32>
    %142 = vector.broadcast %141 : vector<1x64xf32> to vector<8x64xf32>
    %143 = arith.addf %139, %142 : vector<8x64xf32>
    %cst_47 = arith.constant 5.000000e-01 : f32
    %144 = vector.broadcast %cst_47 : f32 to vector<8x64xf32>
    %145 = arith.mulf %144, %143 : vector<8x64xf32>
    %cst_48 = arith.constant 4.471500e-02 : f32
    %146 = vector.broadcast %cst_48 : f32 to vector<8x64xf32>
    %147 = arith.mulf %146, %143 : vector<8x64xf32>
    %148 = arith.mulf %147, %143 : vector<8x64xf32>
    %149 = arith.mulf %148, %143 : vector<8x64xf32>
    %150 = arith.addf %143, %149 : vector<8x64xf32>
    %cst_49 = arith.constant 0.797884583 : f32
    %151 = vector.broadcast %cst_49 : f32 to vector<8x64xf32>
    %152 = arith.mulf %151, %150 : vector<8x64xf32>
    %153 = math.tanh %152 : vector<8x64xf32>
    %cst_50 = arith.constant 1.000000e+00 : f32
    %154 = vector.broadcast %cst_50 : f32 to vector<8x64xf32>
    %155 = arith.addf %154, %153 : vector<8x64xf32>
    %156 = arith.mulf %145, %155 : vector<8x64xf32>
    %157 = arith.truncf %156 : vector<8x64xf32> to vector<8x64xbf16>
    %c0_51 = arith.constant 0 : index
    %c0_52 = arith.constant 0 : index
    %c0_53 = arith.constant 0 : index
    %158 = vector.load %arg12[%c0_51, %c0_52, %c0_53] : memref<1x64x32xbf16, #tpu.memory_space<vmem>>, vector<1x64x32xbf16>
    %159 = vector.shape_cast %158 : vector<1x64x32xbf16> to vector<64x32xbf16>
    %cst_54 = arith.constant dense<0.000000e+00> : vector<8x32xf32>
    %160 = tpu.matmul %157, %159, %cst_54 {dimension_numbers = #tpu.dot_dimension_numbers<[1], [0], [0], [1], [0, 0, 1, 1], [], []>} : vector<8x64xbf16>, vector<64x32xbf16>, vector<8x32xf32> -> vector<8x32xf32>
    %c0_55 = arith.constant 0 : index
    %c0_56 = arith.constant 0 : index
    %c0_57 = arith.constant 0 : index
    %161 = vector.load %arg13[%c0_55, %c0_56, %c0_57] : memref<1x1x32xf32, #tpu.memory_space<vmem>>, vector<1x1x32xf32>
    %162 = vector.shape_cast %161 : vector<1x1x32xf32> to vector<1x32xf32>
    %163 = vector.broadcast %162 : vector<1x32xf32> to vector<8x32xf32>
    %164 = arith.addf %160, %163 : vector<8x32xf32>
    %165 = arith.addf %109, %164 : vector<8x32xf32>
    %c0_58 = arith.constant 0 : index
    %c0_59 = arith.constant 0 : index
    %c0_60 = arith.constant 0 : index
    %166 = vector.load %arg14[%c0_58, %c0_59, %c0_60] : memref<1x8x32xf32, #tpu.memory_space<vmem>>, vector<1x8x32xf32>
    %167 = vector.shape_cast %166 : vector<1x8x32xf32> to vector<8x32xf32>
    %168 = vector.shape_cast %165 : vector<8x32xf32> to vector<1x8x32xf32>
    tpu.vector_store %arg14[%c0_58, %c0_59, %c0_60], %168 {strides = array<i32>} : memref<1x8x32xf32, #tpu.memory_space<vmem>>, vector<1x8x32xf32>,
    return
  }
  func.func @transform_0(%arg0: i32, %arg1: i32) -> (i32, i32, i32) {
    %c0_i32 = arith.constant 0 : i32
    %c0_i32_0 = arith.constant 0 : i32
    %c0_i32_1 = arith.constant 0 : i32
    return %arg0, %c0_i32, %c0_i32_0 : i32, i32, i32
  }
  func.func @transform_1(%arg0: i32, %arg1: i32) -> (i32, i32, i32) {
    %c0_i32 = arith.constant 0 : i32
    %c0_i32_0 = arith.constant 0 : i32
    %c0_i32_1 = arith.constant 0 : i32
    return %arg1, %c0_i32, %c0_i32_0 : i32, i32, i32
  }
  func.func @transform_2(%arg0: i32, %arg1: i32) -> (i32, i32, i32) {
    %c0_i32 = arith.constant 0 : i32
    %c0_i32_0 = arith.constant 0 : i32
    %c0_i32_1 = arith.constant 0 : i32
    return %arg1, %c0_i32, %c0_i32_0 : i32, i32, i32
  }
  func.func @transform_3(%arg0: i32, %arg1: i32) -> (i32, i32, i32) {
    %c0_i32 = arith.constant 0 : i32
    %c0_i32_0 = arith.constant 0 : i32
    %c0_i32_1 = arith.constant 0 : i32
    return %arg1, %c0_i32, %c0_i32_0 : i32, i32, i32
  }
  func.func @transform_4(%arg0: i32, %arg1: i32) -> (i32, i32, i32) {
    %c0_i32 = arith.constant 0 : i32
    %c0_i32_0 = arith.constant 0 : i32
    %c0_i32_1 = arith.constant 0 : i32
    return %arg1, %c0_i32, %c0_i32_0 : i32, i32, i32
  }
  func.func @transform_5(%arg0: i32, %arg1: i32) -> (i32, i32, i32) {
    %c0_i32 = arith.constant 0 : i32
    %c0_i32_0 = arith.constant 0 : i32
    %c0_i32_1 = arith.constant 0 : i32
    return %arg1, %c0_i32, %c0_i32_0 : i32, i32, i32
  }
  func.func @transform_6(%arg0: i32, %arg1: i32) -> (i32, i32, i32) {
    %c0_i32 = arith.constant 0 : i32
    %c0_i32_0 = arith.constant 0 : i32
    %c0_i32_1 = arith.constant 0 : i32
    return %arg1, %c0_i32, %c0_i32_0 : i32, i32, i32
  }
  func.func @transform_7(%arg0: i32, %arg1: i32) -> (i32, i32, i32) {
    %c0_i32 = arith.constant 0 : i32
    %c0_i32_0 = arith.constant 0 : i32
    %c0_i32_1 = arith.constant 0 : i32
    return %arg1, %c0_i32, %c0_i32_0 : i32, i32, i32
  }
  func.func @transform_8(%arg0: i32, %arg1: i32) -> (i32, i32, i32) {
    %c0_i32 = arith.constant 0 : i32
    %c0_i32_0 = arith.constant 0 : i32
    %c0_i32_1 = arith.constant 0 : i32
    return %arg1, %c0_i32, %c0_i32_0 : i32, i32, i32
  }
  func.func @transform_9(%arg0: i32, %arg1: i32) -> (i32, i32, i32) {
    %c0_i32 = arith.constant 0 : i32
    %c0_i32_0 = arith.constant 0 : i32
    %c0_i32_1 = arith.constant 0 : i32
    return %arg1, %c0_i32, %c0_i32_0 : i32, i32, i32
  }
  func.func @transform_10(%arg0: i32, %arg1: i32) -> (i32, i32, i32) {
    %c0_i32 = arith.constant 0 : i32
    %c0_i32_0 = arith.constant 0 : i32
    %c0_i32_1 = arith.constant 0 : i32
    return %arg1, %c0_i32, %c0_i32_0 : i32, i32, i32
  }
  func.func @transform_11(%arg0: i32, %arg1: i32) -> (i32, i32, i32) {
    %c0_i32 = arith.constant 0 : i32
    %c0_i32_0 = arith.constant 0 : i32
    %c0_i32_1 = arith.constant 0 : i32
    return %arg1, %c0_i32, %c0_i32_0 : i32, i32, i32
  }
  func.func @transform_12(%arg0: i32, %arg1: i32) -> (i32, i32, i32) {
    %c0_i32 = arith.constant 0 : i32
    %c0_i32_0 = arith.constant 0 : i32
    %c0_i32_1 = arith.constant 0 : i32
    return %arg0, %c0_i32, %c0_i32_0 : i32, i32, i32
  }
}

</mosaic_0001>

<llo_original>
// kernel: transformer_forward.1
$region0: #{transformer_forward.1}
  #allocation0 [shape = 'u32[]', space=smem, size = 0x4, offset = 0x4, fixed_abs, tag = 'smem constant byte address 0x4 - core index']
  #allocation1 [shape = 'u32[144,128]{1,0:T(1,128)}', space=vmem, size = 0x12000, scoped, tag = 'internal scratch']
  %s0 = inlined_call_operand.hbm [shape: f32[2,8,32], index: 0, kind: input, shape index: {}]
  %s1 = inlined_call_operand.vmem [shape: f32[2,1,32], index: 1, kind: input, shape index: {}]
  %s2 = inlined_call_operand.hbm [shape: f32[2,1,32], index: 2, kind: input, shape index: {}]
  %s3 = inlined_call_operand.vmem [shape: bf16[2,32,96], index: 3, kind: input, shape index: {}]
  %s4 = inlined_call_operand.vmem [shape: bf16[2,32,32], index: 4, kind: input, shape index: {}]
  %s5 = inlined_call_operand.vmem [shape: f32[2,1,32], index: 5, kind: input, shape index: {}]
  %s6 = inlined_call_operand.vmem [shape: f32[2,1,32], index: 6, kind: input, shape index: {}]
  %s7 = inlined_call_operand.vmem [shape: f32[2,1,32], index: 7, kind: input, shape index: {}]
  %s8 = inlined_call_operand.vmem [shape: bf16[2,32,64], index: 8, kind: input, shape index: {}]
  %s9 = inlined_call_operand.hbm [shape: f32[2,1,64], index: 9, kind: input, shape index: {}]
  %s10 = inlined_call_operand.vmem [shape: bf16[2,64,32], index: 10, kind: input, shape index: {}]
  %s11 = inlined_call_operand.hbm [shape: f32[2,1,32], index: 11, kind: input, shape index: {}]
  %s12 = inlined_call_operand.hbm [shape: f32[2,8,32], index: 12, kind: output, shape index: {}]
  %s13 = sld [smem:[#allocation0]]
  $region101: #{transformer_forward.1} parent=0
    _
  %s15 = ssub.s32 1, %s13
  %s16 = scalar_select 0, %s15, %s13
  $region1: #{transformer_forward.1} parent=0
    #allocation2 [shape = 'u8[8192]{0}', space=vmem, size = 0x2000, scoped, tag = 'input window, operand 0']
    #allocation3 [shape = 's32[2]{0}', space=sflag, size = 0x8, scoped, tag = 'scoped memory for transformer_forward.1']
    #allocation4 [shape = 's32[2]{0}', space=sflag, size = 0x8, scoped, tag = 'scoped memory for transformer_forward.1']
    #allocation5 [shape = 'u8[1024]{0}', space=vmem, size = 0x400, scoped, tag = 'input window, operand 2']
    #allocation6 [shape = 's32[2]{0}', space=sflag, size = 0x8, scoped, tag = 'scoped memory for transformer_forward.1']
    #allocation7 [shape = 'u8[1024]{0}', space=vmem, size = 0x400, scoped, tag = 'input window, operand 9']
    #allocation8 [shape = 'u8[1024]{0}', space=vmem, size = 0x400, scoped, tag = 'input window, operand 11']
    #allocation9 [shape = 's32[2]{0}', space=sflag, size = 0x8, scoped, tag = 'scoped memory for transformer_forward.1']
    #allocation10 [shape = 'u8[8192]{0}', space=vmem, size = 0x2000, scoped, tag = 'output window, operand 0']
    %17 = vsyncpa [#allocation3], 0
    %s18 = scalar_lea.sflag [#allocation3], 1
    %19 = vsyncpa %s18, 0
    %20 = vsyncpa [#allocation6], 0
    %s21 = scalar_lea.sflag [#allocation6], 1
    %22 = vsyncpa %s21, 0
    %23 = vsyncpa [#allocation9], 0
    %s24 = scalar_lea.sflag [#allocation9], 1
    %25 = vsyncpa %s24, 0
    %26 = vsyncpa [#allocation4], 0
    %s27 = scalar_lea.sflag [#allocation4], 1
    %28 = vsyncpa %s27, 0
    loop: start=0, step=1, limit=6
    $region2: #{transformer_forward.1} parent=1 // loop_pre_header
      _
    $region3: #{transformer_forward.1} parent=1 // loop_header
      %s30 = sphi 0, %s34
      %p31 = scmp.ge.s32.totalorder %s30, 6
      %s37 = sphi 0, %s49
      %s38 = sphi 0, %s45
      %s39 = sphi 0, %s37
      %s40 = sphi 0, %s38
      %s41 = sphi 0, %s39
      %s42 = sphi 0, %s40
      %s52 = sphi 0, %s54
      %s55 = sphi 0, %s52
      %s56 = sphi 0, %s55
      %s72 = sphi 0, %s56
      %s78 = sphi 0, %s80
      %s81 = sphi 0, %s78
      %s82 = sphi 0, %s81
      %s98 = sphi 0, %s82
      %s104 = sphi 0, %s106
      %s107 = sphi 0, %s104
      %s108 = sphi 0, %s107
      %s124 = sphi 0, %s108
      %s130 = sphi 0, %s132
      %s133 = sphi 0, %s130
      %s134 = sphi 0, %s133
      %s150 = sphi 0, %s134
      %s156 = sphi 0, %s158
      %s159 = sphi 0, %s156
      %s160 = sphi 0, %s159
      %s176 = sphi 0, %s160
      %s182 = sphi 0, %s184
      %s185 = sphi 0, %s182
      %s186 = sphi 0, %s185
      %s202 = sphi 0, %s186
      %s208 = sphi 0, %s210
      %s211 = sphi 0, %s208
      %s212 = sphi 0, %s211
      %s228 = sphi 0, %s212
      %s234 = sphi 0, %s236
      %s237 = sphi 0, %s234
      %s238 = sphi 0, %s237
      %s254 = sphi 0, %s238
      %s260 = sphi 0, %s262
      %s263 = sphi 0, %s260
      %s264 = sphi 0, %s263
      %s280 = sphi 0, %s264
      %s286 = sphi 0, %s288
      %s289 = sphi 0, %s286
      %s290 = sphi 0, %s289
      %s306 = sphi 0, %s290
      %s312 = sphi 0, %s314
      %s315 = sphi 0, %s312
      %s316 = sphi 0, %s315
      %s332 = sphi 0, %s316
      %s338 = sphi 0, %s340
      %s341 = sphi 0, %s338
      %s342 = sphi 0, %s341
      %s358 = sphi 0, %s342
      %s364 = sphi 0, %s366
      %s367 = sphi 0, %s364
      %s368 = sphi 0, %s367
      %s384 = sphi 0, %s368
    $region4: #{transformer_forward.1} parent=1 // loop_header_branch
      %33 = sbr.rel (%p31) target = $region8
    $region5: #{transformer_forward.1} parent=1 // loop_body
      %s35 = ssub.s32 %s30, 1
      %s36 = ssub.s32 %s30, 2
      %s43 = sadd.s32 1, %s38
      %p44 = scmp.ge.s32.totalorder %s43, 2
      %s45 = scalar_select %p44, 0, %s43
      %s46 = sadd.s32 1, %s37
      %s47 = scalar_select %p44, %s46, %s37
      %p48 = scmp.ge.s32.totalorder %s47, 2
      %s49 = scalar_select %p48, 0, %s47
      %s50 = ssub.s32 %s37, %s49
      %p51 = scmp.eq.s32.totalorder %s50, 0
      %s53 = sadd.s32 %s52, 1
      %s54 = scalar_select %p51, %s52, %s53
      %p57 = pneg %p51
      %p58 = scmp.eq.s32.totalorder %s30, 3
      %p59 = por %p57, %p58
      %p60 = scmp.ne.s32.totalorder %s52, %s55
      %p61 = scmp.eq.s32.totalorder %s30, 0
      %p62 = por %p60, %p61
      %p63 = scmp.ne.s32.totalorder %s52, %s55
      %p64 = scmp.eq.s32.totalorder %s35, 3
      %p65 = por %p63, %p64
      %p66 = scmp.ne.s32.totalorder %s55, %s56
      %p67 = scmp.eq.s32.totalorder %s35, 0
      %p68 = por %p66, %p67
      %p69 = scmp.ne.s32.totalorder %s55, %s56
      %p70 = scmp.eq.s32.totalorder %s36, 3
      %p71 = por %p69, %p70
      %p73 = scmp.ne.s32.totalorder %s56, %s72
      %p74 = scmp.eq.s32.totalorder %s36, 0
      %p75 = por %p73, %p74
      %s76 = ssub.s32 %s38, %s45
      %p77 = scmp.eq.s32.totalorder %s76, 0
      %s79 = sadd.s32 %s78, 1
      %s80 = scalar_select %p77, %s78, %s79
      %p83 = pneg %p77
      %p84 = scmp.eq.s32.totalorder %s30, 3
      %p85 = por %p83, %p84
      %p86 = scmp.ne.s32.totalorder %s78, %s81
      %p87 = scmp.eq.s32.totalorder %s30, 0
      %p88 = por %p86, %p87
      %p89 = scmp.ne.s32.totalorder %s78, %s81
      %p90 = scmp.eq.s32.totalorder %s35, 3
      %p91 = por %p89, %p90
      %p92 = scmp.ne.s32.totalorder %s81, %s82
      %p93 = scmp.eq.s32.totalorder %s35, 0
      %p94 = por %p92, %p93
      %p95 = scmp.ne.s32.totalorder %s81, %s82
      %p96 = scmp.eq.s32.totalorder %s36, 3
      %p97 = por %p95, %p96
      %p99 = scmp.ne.s32.totalorder %s82, %s98
      %p100 = scmp.eq.s32.totalorder %s36, 0
      %p101 = por %p99, %p100
      %s102 = ssub.s32 %s38, %s45
      %p103 = scmp.eq.s32.totalorder %s102, 0
      %s105 = sadd.s32 %s104, 1
      %s106 = scalar_select %p103, %s104, %s105
      %p109 = pneg %p103
      %p110 = scmp.eq.s32.totalorder %s30, 3
      %p111 = por %p109, %p110
      %p112 = scmp.ne.s32.totalorder %s104, %s107
      %p113 = scmp.eq.s32.totalorder %s30, 0
      %p114 = por %p112, %p113
      %p115 = scmp.ne.s32.totalorder %s104, %s107
      %p116 = scmp.eq.s32.totalorder %s35, 3
      %p117 = por %p115, %p116
      %p118 = scmp.ne.s32.totalorder %s107, %s108
      %p119 = scmp.eq.s32.totalorder %s35, 0
      %p120 = por %p118, %p119
      %p121 = scmp.ne.s32.totalorder %s107, %s108
      %p122 = scmp.eq.s32.totalorder %s36, 3
      %p123 = por %p121, %p122
      %p125 = scmp.ne.s32.totalorder %s108, %s124
      %p126 = scmp.eq.s32.totalorder %s36, 0
      %p127 = por %p125, %p126
      %s128 = ssub.s32 %s38, %s45
      %p129 = scmp.eq.s32.totalorder %s128, 0
      %s131 = sadd.s32 %s130, 1
      %s132 = scalar_select %p129, %s130, %s131
      %p135 = pneg %p129
      %p136 = scmp.eq.s32.totalorder %s30, 3
      %p137 = por %p135, %p136
      %p138 = scmp.ne.s32.totalorder %s130, %s133
      %p139 = scmp.eq.s32.totalorder %s30, 0
      %p140 = por %p138, %p139
      %p141 = scmp.ne.s32.totalorder %s130, %s133
      %p142 = scmp.eq.s32.totalorder %s35, 3
      %p143 = por %p141, %p142
      %p144 = scmp.ne.s32.totalorder %s133, %s134
      %p145 = scmp.eq.s32.totalorder %s35, 0
      %p146 = por %p144, %p145
      %p147 = scmp.ne.s32.totalorder %s133, %s134
      %p148 = scmp.eq.s32.totalorder %s36, 3
      %p149 = por %p147, %p148
      %p151 = scmp.ne.s32.totalorder %s134, %s150
      %p152 = scmp.eq.s32.totalorder %s36, 0
      %p153 = por %p151, %p152
      %s154 = ssub.s32 %s38, %s45
      %p155 = scmp.eq.s32.totalorder %s154, 0
      %s157 = sadd.s32 %s156, 1
      %s158 = scalar_select %p155, %s156, %s157
      %p161 = pneg %p155
      %p162 = scmp.eq.s32.totalorder %s30, 3
      %p163 = por %p161, %p162
      %p164 = scmp.ne.s32.totalorder %s156, %s159
      %p165 = scmp.eq.s32.totalorder %s30, 0
      %p166 = por %p164, %p165
      %p167 = scmp.ne.s32.totalorder %s156, %s159
      %p168 = scmp.eq.s32.totalorder %s35, 3
      %p169 = por %p167, %p168
      %p170 = scmp.ne.s32.totalorder %s159, %s160
      %p171 = scmp.eq.s32.totalorder %s35, 0
      %p172 = por %p170, %p171
      %p173 = scmp.ne.s32.totalorder %s159, %s160
      %p174 = scmp.eq.s32.totalorder %s36, 3
      %p175 = por %p173, %p174
      %p177 = scmp.ne.s32.totalorder %s160, %s176
      %p178 = scmp.eq.s32.totalorder %s36, 0
      %p179 = por %p177, %p178
      %s180 = ssub.s32 %s38, %s45
      %p181 = scmp.eq.s32.totalorder %s180, 0
      %s183 = sadd.s32 %s182, 1
      %s184 = scalar_select %p181, %s182, %s183
      %p187 = pneg %p181
      %p188 = scmp.eq.s32.totalorder %s30, 3
      %p189 = por %p187, %p188
      %p190 = scmp.ne.s32.totalorder %s182, %s185
      %p191 = scmp.eq.s32.totalorder %s30, 0
      %p192 = por %p190, %p191
      %p193 = scmp.ne.s32.totalorder %s182, %s185
      %p194 = scmp.eq.s32.totalorder %s35, 3
      %p195 = por %p193, %p194
      %p196 = scmp.ne.s32.totalorder %s185, %s186
      %p197 = scmp.eq.s32.totalorder %s35, 0
      %p198 = por %p196, %p197
      %p199 = scmp.ne.s32.totalorder %s185, %s186
      %p200 = scmp.eq.s32.totalorder %s36, 3
      %p201 = por %p199, %p200
      %p203 = scmp.ne.s32.totalorder %s186, %s202
      %p204 = scmp.eq.s32.totalorder %s36, 0
      %p205 = por %p203, %p204
      %s206 = ssub.s32 %s38, %s45
      %p207 = scmp.eq.s32.totalorder %s206, 0
      %s209 = sadd.s32 %s208, 1
      %s210 = scalar_select %p207, %s208, %s209
      %p213 = pneg %p207
      %p214 = scmp.eq.s32.totalorder %s30, 3
      %p215 = por %p213, %p214
      %p216 = scmp.ne.s32.totalorder %s208, %s211
      %p217 = scmp.eq.s32.totalorder %s30, 0
      %p218 = por %p216, %p217
      %p219 = scmp.ne.s32.totalorder %s208, %s211
      %p220 = scmp.eq.s32.totalorder %s35, 3
      %p221 = por %p219, %p220
      %p222 = scmp.ne.s32.totalorder %s211, %s212
      %p223 = scmp.eq.s32.totalorder %s35, 0
      %p224 = por %p222, %p223
      %p225 = scmp.ne.s32.totalorder %s211, %s212
      %p226 = scmp.eq.s32.totalorder %s36, 3
      %p227 = por %p225, %p226
      %p229 = scmp.ne.s32.totalorder %s212, %s228
      %p230 = scmp.eq.s32.totalorder %s36, 0
      %p231 = por %p229, %p230
      %s232 = ssub.s32 %s38, %s45
      %p233 = scmp.eq.s32.totalorder %s232, 0
      %s235 = sadd.s32 %s234, 1
      %s236 = scalar_select %p233, %s234, %s235
      %p239 = pneg %p233
      %p240 = scmp.eq.s32.totalorder %s30, 3
      %p241 = por %p239, %p240
      %p242 = scmp.ne.s32.totalorder %s234, %s237
      %p243 = scmp.eq.s32.totalorder %s30, 0
      %p244 = por %p242, %p243
      %p245 = scmp.ne.s32.totalorder %s234, %s237
      %p246 = scmp.eq.s32.totalorder %s35, 3
      %p247 = por %p245, %p246
      %p248 = scmp.ne.s32.totalorder %s237, %s238
      %p249 = scmp.eq.s32.totalorder %s35, 0
      %p250 = por %p248, %p249
      %p251 = scmp.ne.s32.totalorder %s237, %s238
      %p252 = scmp.eq.s32.totalorder %s36, 3
      %p253 = por %p251, %p252
      %p255 = scmp.ne.s32.totalorder %s238, %s254
      %p256 = scmp.eq.s32.totalorder %s36, 0
      %p257 = por %p255, %p256
      %s258 = ssub.s32 %s38, %s45
      %p259 = scmp.eq.s32.totalorder %s258, 0
      %s261 = sadd.s32 %s260, 1
      %s262 = scalar_select %p259, %s260, %s261
      %p265 = pneg %p259
      %p266 = scmp.eq.s32.totalorder %s30, 3
      %p267 = por %p265, %p266
      %p268 = scmp.ne.s32.totalorder %s260, %s263
      %p269 = scmp.eq.s32.totalorder %s30, 0
      %p270 = por %p268, %p269
      %p271 = scmp.ne.s32.totalorder %s260, %s263
      %p272 = scmp.eq.s32.totalorder %s35, 3
      %p273 = por %p271, %p272
      %p274 = scmp.ne.s32.totalorder %s263, %s264
      %p275 = scmp.eq.s32.totalorder %s35, 0
      %p276 = por %p274, %p275
      %p277 = scmp.ne.s32.totalorder %s263, %s264
      %p278 = scmp.eq.s32.totalorder %s36, 3
      %p279 = por %p277, %p278
      %p281 = scmp.ne.s32.totalorder %s264, %s280
      %p282 = scmp.eq.s32.totalorder %s36, 0
      %p283 = por %p281, %p282
      %s284 = ssub.s32 %s38, %s45
      %p285 = scmp.eq.s32.totalorder %s284, 0
      %s287 = sadd.s32 %s286, 1
      %s288 = scalar_select %p285, %s286, %s287
      %p291 = pneg %p285
      %p292 = scmp.eq.s32.totalorder %s30, 3
      %p293 = por %p291, %p292
      %p294 = scmp.ne.s32.totalorder %s286, %s289
      %p295 = scmp.eq.s32.totalorder %s30, 0
      %p296 = por %p294, %p295
      %p297 = scmp.ne.s32.totalorder %s286, %s289
      %p298 = scmp.eq.s32.totalorder %s35, 3
      %p299 = por %p297, %p298
      %p300 = scmp.ne.s32.totalorder %s289, %s290
      %p301 = scmp.eq.s32.totalorder %s35, 0
      %p302 = por %p300, %p301
      %p303 = scmp.ne.s32.totalorder %s289, %s290
      %p304 = scmp.eq.s32.totalorder %s36, 3
      %p305 = por %p303, %p304
      %p307 = scmp.ne.s32.totalorder %s290, %s306
      %p308 = scmp.eq.s32.totalorder %s36, 0
      %p309 = por %p307, %p308
      %s310 = ssub.s32 %s38, %s45
      %p311 = scmp.eq.s32.totalorder %s310, 0
      %s313 = sadd.s32 %s312, 1
      %s314 = scalar_select %p311, %s312, %s313
      %p317 = pneg %p311
      %p318 = scmp.eq.s32.totalorder %s30, 3
      %p319 = por %p317, %p318
      %p320 = scmp.ne.s32.totalorder %s312, %s315
      %p321 = scmp.eq.s32.totalorder %s30, 0
      %p322 = por %p320, %p321
      %p323 = scmp.ne.s32.totalorder %s312, %s315
      %p324 = scmp.eq.s32.totalorder %s35, 3
      %p325 = por %p323, %p324
      %p326 = scmp.ne.s32.totalorder %s315, %s316
      %p327 = scmp.eq.s32.totalorder %s35, 0
      %p328 = por %p326, %p327
      %p329 = scmp.ne.s32.totalorder %s315, %s316
      %p330 = scmp.eq.s32.totalorder %s36, 3
      %p331 = por %p329, %p330
      %p333 = scmp.ne.s32.totalorder %s316, %s332
      %p334 = scmp.eq.s32.totalorder %s36, 0
      %p335 = por %p333, %p334
      %s336 = ssub.s32 %s38, %s45
      %p337 = scmp.eq.s32.totalorder %s336, 0
      %s339 = sadd.s32 %s338, 1
      %s340 = scalar_select %p337, %s338, %s339
      %p343 = pneg %p337
      %p344 = scmp.eq.s32.totalorder %s30, 3
      %p345 = por %p343, %p344
      %p346 = scmp.ne.s32.totalorder %s338, %s341
      %p347 = scmp.eq.s32.totalorder %s30, 0
      %p348 = por %p346, %p347
      %p349 = scmp.ne.s32.totalorder %s338, %s341
      %p350 = scmp.eq.s32.totalorder %s35, 3
      %p351 = por %p349, %p350
      %p352 = scmp.ne.s32.totalorder %s341, %s342
      %p353 = scmp.eq.s32.totalorder %s35, 0
      %p354 = por %p352, %p353
      %p355 = scmp.ne.s32.totalorder %s341, %s342
      %p356 = scmp.eq.s32.totalorder %s36, 3
      %p357 = por %p355, %p356
      %p359 = scmp.ne.s32.totalorder %s342, %s358
      %p360 = scmp.eq.s32.totalorder %s36, 0
      %p361 = por %p359, %p360
      %s362 = ssub.s32 %s37, %s49
      %p363 = scmp.eq.s32.totalorder %s362, 0
      %s365 = sadd.s32 %s364, 1
      %s366 = scalar_select %p363, %s364, %s365
      %p369 = pneg %p363
      %p370 = scmp.eq.s32.totalorder %s30, 3
      %p371 = por %p369, %p370
      %p372 = scmp.ne.s32.totalorder %s364, %s367
      %p373 = scmp.eq.s32.totalorder %s30, 0
      %p374 = por %p372, %p373
      %p375 = scmp.ne.s32.totalorder %s364, %s367
      %p376 = scmp.eq.s32.totalorder %s35, 3
      %p377 = por %p375, %p376
      %p378 = scmp.ne.s32.totalorder %s367, %s368
      %p379 = scmp.eq.s32.totalorder %s35, 0
      %p380 = por %p378, %p379
      %p381 = scmp.ne.s32.totalorder %s367, %s368
      %p382 = scmp.eq.s32.totalorder %s36, 3
      %p383 = por %p381, %p382
      %p385 = scmp.ne.s32.totalorder %s368, %s384
      %p386 = scmp.eq.s32.totalorder %s36, 0
      %p387 = por %p385, %p386
      %p388 = scmp.le.s32.totalorder 1, %s30
      %p389 = scmp.lt.s32.totalorder %s30, 5
      %p390 = pnand %p388, %p389
      %p391 = pneg %p390
      // Predicated region
      $region9: #{transformer_forward.1} parent=5 // pred_check
        _
      $region10: #{transformer_forward.1} parent=5 // pred_check_branch
        %393 = sbr.rel (%p390) target = $region12
      $region11: #{transformer_forward.1} parent=5 // pred_region
        %s394 = ssub.s32 %s30, 1
      $region12: #{transformer_forward.1} parent=5 // pred_fallthru
        _
      %p395 = scmp.lt.s32.totalorder %s30, 4
      // Predicated region
      $region13: #{transformer_forward.1} parent=5 // pred_check
        %p396 = pneg %p395
      $region14: #{transformer_forward.1} parent=5 // pred_check_branch
        %398 = sbr.rel (%p396) target = $region16
      $region15: #{transformer_forward.1} parent=5 // pred_region
        // Predicated region
        $region17: #{transformer_forward.1} parent=15 // pred_check
          %p399 = pneg %p62
        $region18: #{transformer_forward.1} parent=15 // pred_check_branch
          %401 = sbr.rel (%p399) target = $region20
        $region19: #{transformer_forward.1} parent=15 // pred_region
          %s402 = sand.u32 %s52, 1
          %s403 = scalar_lea.sflag [#allocation3], %s402
          %s404 = sand.u32 %s52, 1
          %s405 = smul.addr %s404, 8
          %s406 = scalar_lea.vmem [#allocation2], %s405
          %s408 = ssub.s32 128, 128
          %409 = vsyncadd %s403, %s408
          %s410 = smul.addr %s37, 128
          %s411 = scalar_lea.hbm %s0, %s410
          %s413 = sshll.u32 %s406, 4
          %s414 = int_to_ptr.vmem [resolvable:$true] %s413
          %416 = dma.hbm_to_vmem [thread:$0]  %s411, 128, %s414, %s403
        $region20: #{transformer_forward.1} parent=15 // pred_fallthru
          _
        // Predicated region
        $region21: #{transformer_forward.1} parent=15 // pred_check
          %p417 = pneg %p88
        $region22: #{transformer_forward.1} parent=15 // pred_check_branch
          %419 = sbr.rel (%p417) target = $region24
        $region23: #{transformer_forward.1} parent=15 // pred_region
          %p420 = scmp.lt.s32.totalorder %s38, 1
          %s421 = scalar_select %p420, %s38, 1
          %s422 = scalar_lea.vmem %s1, %s421
        $region24: #{transformer_forward.1} parent=15 // pred_fallthru
          _
        // Predicated region
        $region25: #{transformer_forward.1} parent=15 // pred_check
          %p423 = pneg %p114
        $region26: #{transformer_forward.1} parent=15 // pred_check_branch
          %425 = sbr.rel (%p423) target = $region28
        $region27: #{transformer_forward.1} parent=15 // pred_region
          %s426 = sand.u32 %s30, 1
          %s427 = scalar_lea.sflag [#allocation6], %s426
          %s428 = sand.u32 %s104, 1
          %s429 = scalar_lea.vmem [#allocation5], %s428
          %s431 = ssub.s32 16, 16
          %432 = vsyncadd %s427, %s431
          %s433 = smul.addr %s38, 16
          %s434 = scalar_lea.hbm %s2, %s433
          %s436 = sshll.u32 %s429, 4
          %s437 = int_to_ptr.vmem [resolvable:$true] %s436
          %439 = dma.hbm_to_vmem [thread:$0]  %s434, 16, %s437, %s427
        $region28: #{transformer_forward.1} parent=15 // pred_fallthru
          _
        // Predicated region
        $region29: #{transformer_forward.1} parent=15 // pred_check
          %p440 = pneg %p140
        $region30: #{transformer_forward.1} parent=15 // pred_check_branch
          %442 = sbr.rel (%p440) target = $region32
        $region31: #{transformer_forward.1} parent=15 // pred_region
          %p443 = scmp.lt.s32.totalorder %s38, 1
          %s444 = scalar_select %p443, %s38, 1
          %s445 = smul.addr %s444, 4
          %s446 = smul.addr %s445, 4
          %s447 = scalar_lea.vmem %s3, %s446
        $region32: #{transformer_forward.1} parent=15 // pred_fallthru
          _
        // Predicated region
        $region33: #{transformer_forward.1} parent=15 // pred_check
          %p448 = pneg %p166
        $region34: #{transformer_forward.1} parent=15 // pred_check_branch
          %450 = sbr.rel (%p448) target = $region36
        $region35: #{transformer_forward.1} parent=15 // pred_region
          %p451 = scmp.lt.s32.totalorder %s38, 1
          %s452 = scalar_select %p451, %s38, 1
          %s453 = smul.addr %s452, 4
          %s454 = smul.addr %s453, 4
          %s455 = scalar_lea.vmem %s4, %s454
        $region36: #{transformer_forward.1} parent=15 // pred_fallthru
          _
        // Predicated region
        $region37: #{transformer_forward.1} parent=15 // pred_check
          %p456 = pneg %p192
        $region38: #{transformer_forward.1} parent=15 // pred_check_branch
          %458 = sbr.rel (%p456) target = $region40
        $region39: #{transformer_forward.1} parent=15 // pred_region
          %p459 = scmp.lt.s32.totalorder %s38, 1
          %s460 = scalar_select %p459, %s38, 1
          %s461 = scalar_lea.vmem %s5, %s460
        $region40: #{transformer_forward.1} parent=15 // pred_fallthru
          _
        // Predicated region
        $region41: #{transformer_forward.1} parent=15 // pred_check
          %p462 = pneg %p218
        $region42: #{transformer_forward.1} parent=15 // pred_check_branch
          %464 = sbr.rel (%p462) target = $region44
        $region43: #{transformer_forward.1} parent=15 // pred_region
          %p465 = scmp.lt.s32.totalorder %s38, 1
          %s466 = scalar_select %p465, %s38, 1
          %s467 = scalar_lea.vmem %s6, %s466
        $region44: #{transformer_forward.1} parent=15 // pred_fallthru
          _
        // Predicated region
        $region45: #{transformer_forward.1} parent=15 // pred_check
          %p468 = pneg %p244
        $region46: #{transformer_forward.1} parent=15 // pred_check_branch
          %470 = sbr.rel (%p468) target = $region48
        $region47: #{transformer_forward.1} parent=15 // pred_region
          %p471 = scmp.lt.s32.totalorder %s38, 1
          %s472 = scalar_select %p471, %s38, 1
          %s473 = scalar_lea.vmem %s7, %s472
        $region48: #{transformer_forward.1} parent=15 // pred_fallthru
          _
        // Predicated region
        $region49: #{transformer_forward.1} parent=15 // pred_check
          %p474 = pneg %p270
        $region50: #{transformer_forward.1} parent=15 // pred_check_branch
          %476 = sbr.rel (%p474) target = $region52
        $region51: #{transformer_forward.1} parent=15 // pred_region
          %p477 = scmp.lt.s32.totalorder %s38, 1
          %s478 = scalar_select %p477, %s38, 1
          %s479 = smul.addr %s478, 4
          %s480 = smul.addr %s479, 4
          %s481 = scalar_lea.vmem %s8, %s480
        $region52: #{transformer_forward.1} parent=15 // pred_fallthru
          _
        // Predicated region
        $region53: #{transformer_forward.1} parent=15 // pred_check
          %p482 = pneg %p296
        $region54: #{transformer_forward.1} parent=15 // pred_check_branch
          %484 = sbr.rel (%p482) target = $region56
        $region55: #{transformer_forward.1} parent=15 // pred_region
          %s485 = sand.u32 %s30, 1
          %s486 = scalar_lea.sflag [#allocation6], %s485
          %s487 = sand.u32 %s286, 1
          %s488 = scalar_lea.vmem [#allocation7], %s487
          %s490 = ssub.s32 16, 16
          %491 = vsyncadd %s486, %s490
          %s492 = smul.addr %s38, 16
          %s493 = scalar_lea.hbm %s9, %s492
          %s495 = sshll.u32 %s488, 4
          %s496 = int_to_ptr.vmem [resolvable:$true] %s495
          %498 = dma.hbm_to_vmem [thread:$0]  %s493, 16, %s496, %s486
        $region56: #{transformer_forward.1} parent=15 // pred_fallthru
          _
        // Predicated region
        $region57: #{transformer_forward.1} parent=15 // pred_check
          %p499 = pneg %p322
        $region58: #{transformer_forward.1} parent=15 // pred_check_branch
          %501 = sbr.rel (%p499) target = $region60
        $region59: #{transformer_forward.1} parent=15 // pred_region
          %p502 = scmp.lt.s32.totalorder %s38, 1
          %s503 = scalar_select %p502, %s38, 1
          %s504 = smul.addr %s503, 8
          %s505 = smul.addr %s504, 4
          %s506 = scalar_lea.vmem %s10, %s505
        $region60: #{transformer_forward.1} parent=15 // pred_fallthru
          _
        // Predicated region
        $region61: #{transformer_forward.1} parent=15 // pred_check
          %p507 = pneg %p348
        $region62: #{transformer_forward.1} parent=15 // pred_check_branch
          %509 = sbr.rel (%p507) target = $region64
        $region63: #{transformer_forward.1} parent=15 // pred_region
          %s510 = sand.u32 %s338, 1
          %s511 = scalar_lea.sflag [#allocation9], %s510
          %s512 = sand.u32 %s338, 1
          %s513 = scalar_lea.vmem [#allocation8], %s512
          %s515 = ssub.s32 16, 16
          %516 = vsyncadd %s511, %s515
          %s517 = smul.addr %s38, 16
          %s518 = scalar_lea.hbm %s11, %s517
          %s520 = sshll.u32 %s513, 4
          %s521 = int_to_ptr.vmem [resolvable:$true] %s520
          %523 = dma.hbm_to_vmem [thread:$0]  %s518, 16, %s521, %s511
        $region64: #{transformer_forward.1} parent=15 // pred_fallthru
          _
      $region16: #{transformer_forward.1} parent=5 // pred_fallthru
        _
      %p524 = scmp.le.s32.totalorder 1, %s30
      %p525 = scmp.lt.s32.totalorder %s30, 5
      %p526 = pnand %p524, %p525
      %p527 = pneg %p526
      // Predicated region
      $region65: #{transformer_forward.1} parent=5 // pred_check
        _
      $region66: #{transformer_forward.1} parent=5 // pred_check_branch
        %529 = sbr.rel (%p526) target = $region68
      $region67: #{transformer_forward.1} parent=5 // pred_region
        %s530 = ssub.s32 %s30, 1
        %s531 = sand.u32 %s55, 1
        %s532 = scalar_lea.sflag [#allocation3], %s531
        %s533 = sand.u32 %s55, 1
        %s534 = smul.addr %s533, 8
        %s535 = scalar_lea.vmem [#allocation2], %s534
        // Predicated region
        $region69: #{transformer_forward.1} parent=67 // pred_check
          %p536 = pneg %p68
        $region70: #{transformer_forward.1} parent=67 // pred_check_branch
          %538 = sbr.rel (%p536) target = $region72
        $region71: #{transformer_forward.1} parent=67 // pred_region
          %539 = dma.done %s532, 128
        $region72: #{transformer_forward.1} parent=67 // pred_fallthru
          _
        %s540 = sand.u32 %s35, 1
        %s541 = scalar_lea.sflag [#allocation6], %s540
        %s542 = sand.u32 %s107, 1
        %s543 = scalar_lea.vmem [#allocation5], %s542
        // Predicated region
        $region73: #{transformer_forward.1} parent=67 // pred_check
          %p544 = pneg %p120
        $region74: #{transformer_forward.1} parent=67 // pred_check_branch
          %546 = sbr.rel (%p544) target = $region76
        $region75: #{transformer_forward.1} parent=67 // pred_region
          %547 = dma.done %s541, 16
        $region76: #{transformer_forward.1} parent=67 // pred_fallthru
          _
        %s548 = sand.u32 %s35, 1
        %s549 = scalar_lea.sflag [#allocation6], %s548
        %s550 = sand.u32 %s289, 1
        %s551 = scalar_lea.vmem [#allocation7], %s550
        // Predicated region
        $region77: #{transformer_forward.1} parent=67 // pred_check
          %p552 = pneg %p302
        $region78: #{transformer_forward.1} parent=67 // pred_check_branch
          %554 = sbr.rel (%p552) target = $region80
        $region79: #{transformer_forward.1} parent=67 // pred_region
          %555 = dma.done %s549, 16
        $region80: #{transformer_forward.1} parent=67 // pred_fallthru
          _
        %s556 = sand.u32 %s341, 1
        %s557 = scalar_lea.sflag [#allocation9], %s556
        %s558 = sand.u32 %s341, 1
        %s559 = scalar_lea.vmem [#allocation8], %s558
        // Predicated region
        $region81: #{transformer_forward.1} parent=67 // pred_check
          %p560 = pneg %p354
        $region82: #{transformer_forward.1} parent=67 // pred_check_branch
          %562 = sbr.rel (%p560) target = $region84
        $region83: #{transformer_forward.1} parent=67 // pred_region
          %563 = dma.done %s557, 16
        $region84: #{transformer_forward.1} parent=67 // pred_fallthru
          _
        %s564 = sand.u32 %s55, 1
        %s565 = scalar_lea.sflag [#allocation3], %s564
        %s566 = sand.u32 %s55, 1
        %s567 = smul.addr %s566, 8
        %s568 = scalar_lea.vmem [#allocation2], %s567
        %p569 = pneg %p68
        %p570 = pneg %p65
        %p571 = scmp.lt.s32.totalorder %s40, 1
        %s572 = scalar_select %p571, %s40, 1
        %s573 = scalar_lea.vmem %s1, %s572
        %p574 = pneg %p94
        %p575 = pneg %p91
        %s576 = sand.u32 %s35, 1
        %s577 = scalar_lea.sflag [#allocation6], %s576
        %s578 = sand.u32 %s107, 1
        %s579 = scalar_lea.vmem [#allocation5], %s578
        %p580 = pneg %p120
        %p581 = pneg %p117
        %p582 = scmp.lt.s32.totalorder %s40, 1
        %s583 = scalar_select %p582, %s40, 1
        %s584 = smul.addr %s583, 4
        %s585 = smul.addr %s584, 4
        %s586 = scalar_lea.vmem %s3, %s585
        %p587 = pneg %p146
        %p588 = pneg %p143
        %p589 = scmp.lt.s32.totalorder %s40, 1
        %s590 = scalar_select %p589, %s40, 1
        %s591 = smul.addr %s590, 4
        %s592 = smul.addr %s591, 4
        %s593 = scalar_lea.vmem %s4, %s592
        %p594 = pneg %p172
        %p595 = pneg %p169
        %p596 = scmp.lt.s32.totalorder %s40, 1
        %s597 = scalar_select %p596, %s40, 1
        %s598 = scalar_lea.vmem %s5, %s597
        %p599 = pneg %p198
        %p600 = pneg %p195
        %p601 = scmp.lt.s32.totalorder %s40, 1
        %s602 = scalar_select %p601, %s40, 1
        %s603 = scalar_lea.vmem %s6, %s602
        %p604 = pneg %p224
        %p605 = pneg %p221
        %p606 = scmp.lt.s32.totalorder %s40, 1
        %s607 = scalar_select %p606, %s40, 1
        %s608 = scalar_lea.vmem %s7, %s607
        %p609 = pneg %p250
        %p610 = pneg %p247
        %p611 = scmp.lt.s32.totalorder %s40, 1
        %s612 = scalar_select %p611, %s40, 1
        %s613 = smul.addr %s612, 4
        %s614 = smul.addr %s613, 4
        %s615 = scalar_lea.vmem %s8, %s614
        %p616 = pneg %p276
        %p617 = pneg %p273
        %s618 = sand.u32 %s35, 1
        %s619 = scalar_lea.sflag [#allocation6], %s618
        %s620 = sand.u32 %s289, 1
        %s621 = scalar_lea.vmem [#allocation7], %s620
        %p622 = pneg %p302
        %p623 = pneg %p299
        %p624 = scmp.lt.s32.totalorder %s40, 1
        %s625 = scalar_select %p624, %s40, 1
        %s626 = smul.addr %s625, 8
        %s627 = smul.addr %s626, 4
        %s628 = scalar_lea.vmem %s10, %s627
        %p629 = pneg %p328
        %p630 = pneg %p325
        %s631 = sand.u32 %s341, 1
        %s632 = scalar_lea.sflag [#allocation9], %s631
        %s633 = sand.u32 %s341, 1
        %s634 = scalar_lea.vmem [#allocation8], %s633
        %p635 = pneg %p354
        %p636 = pneg %p351
        %p637 = pneg %p380
        %p638 = pneg %p377
        %s639 = sand.u32 %s367, 1
        %s640 = scalar_lea.sflag [#allocation4], %s639
        %s641 = sand.u32 %s367, 1
        %s642 = smul.addr %s641, 8
        %s643 = scalar_lea.vmem [#allocation10], %s642
        %p644 = scmp.lt.s32.totalorder %s40, 1
        %s645 = scalar_select %p644, %s40, 1
        %s646 = scalar_lea.vmem %s1, %s645
        %p647 = scmp.lt.s32.totalorder %s40, 1
        %s648 = scalar_select %p647, %s40, 1
        %s649 = smul.addr %s648, 4
        %s650 = smul.addr %s649, 4
        %s651 = scalar_lea.vmem %s3, %s650
        %p652 = scmp.lt.s32.totalorder %s40, 1
        %s653 = scalar_select %p652, %s40, 1
        %s654 = smul.addr %s653, 4
        %s655 = smul.addr %s654, 4
        %s656 = scalar_lea.vmem %s4, %s655
        %p657 = scmp.lt.s32.totalorder %s40, 1
        %s658 = scalar_select %p657, %s40, 1
        %s659 = scalar_lea.vmem %s5, %s658
        %p660 = scmp.lt.s32.totalorder %s40, 1
        %s661 = scalar_select %p660, %s40, 1
        %s662 = scalar_lea.vmem %s6, %s661
        %p663 = scmp.lt.s32.totalorder %s40, 1
        %s664 = scalar_select %p663, %s40, 1
        %s665 = scalar_lea.vmem %s7, %s664
        %p666 = scmp.lt.s32.totalorder %s40, 1
        %s667 = scalar_select %p666, %s40, 1
        %s668 = smul.addr %s667, 4
        %s669 = smul.addr %s668, 4
        %s670 = scalar_lea.vmem %s8, %s669
        %p671 = scmp.lt.s32.totalorder %s40, 1
        %s672 = scalar_select %p671, %s40, 1
        %s673 = smul.addr %s672, 8
        %s674 = smul.addr %s673, 4
        %s675 = scalar_lea.vmem %s10, %s674
        %p677 = scmp.eq.s32.totalorder %s40, 0
        // Predicated region
        $region85: #{transformer_forward.1} parent=67 // pred_check
          %p678 = pneg %p677
        $region86: #{transformer_forward.1} parent=67 // pred_check_branch
          %680 = sbr.rel (%p678) target = $region88
        $region87: #{transformer_forward.1} parent=67 // pred_region
          %v681 = vld [vmem:[%s535] sm:$0xff]
          %vm682 = vcmask 261120
          %683 = vst.msk [vmem:[%s643] sm:$0xff] %vm682, %v681
        $region88: #{transformer_forward.1} parent=67 // pred_fallthru
          _
        %v684 = vld [vmem:[%s643] sm:$0xff]
        %v685 = vld [vmem:[%s646] sm:$0x1]
        %v686 = vld [vmem:[%s543] sm:$0x1]
        %vm687 = vcmask 261120
        %v688 = vsel %vm687, %v684, 0.0
        %689 = vadd.xlane.f32.xlu0 %v688
        %v690 = vpop.xlane.xlu0 %689
        %v691 = vrcp.pop 32.0
        %v692 = vmul.f32 %v690, %v691
        %v693 = vsub.f32 %v684, %v692
        %v694 = vmul.f32 %v693, %v693
        %v695 = vsel %vm687, %v694, 0.0
        %696 = vadd.xlane.f32.xlu0 %v695
        %v697 = vpop.xlane.xlu0 %696
        %v698 = vmul.f32 %v697, %v691
        %v699 = vadd.f32 %v698, 1e-05
        %v700 = vrsqrt.pop %v699
        %v701 = vmul.f32 %v693, %v700
        %v703 = vlaneseq
        %v704 = vshrl.u32 %v703, 7
        %v705 = vsub.s32 0, %v704
        %v706 = vrot.slane %v685, %v705
        %v708 = vmul.f32 %v701, %v706
        %v710 = vlaneseq
        %v711 = vshrl.u32 %v710, 7
        %v712 = vsub.s32 0, %v711
        %v713 = vrot.slane %v686, %v712
        %v715 = vadd.f32 %v708, %v713
        %v716 = vpack.c.bf16 %v715, %v715
        %v717 = vld [vmem:[%s651] sm:$0xf]
        %v718 = vld [vmem:[%s651 + $0x4] sm:$0xf]
        %v719 = vld [vmem:[%s651 + $0x8] sm:$0xf]
        %v720 = vld [vmem:[%s651 + $0xc] sm:$0xf]
        %v725 = vunpack.c.l.b16 %v717
        %v726 = vunpack.c.l.b16 %v718
        %v727 = vunpack.c.l.b16 %v719
        %v728 = vunpack.c.l.b16 %v720
        %v729 = vpack.c.b16 %v726, %v725
        %v730 = vpack.c.b16 %v728, %v727
        %v734 = vsel %vm687, %v716, 0
        %736 = vmatprep.subr.bf16.mxu0 0
        %737 = vmatpush1.bf16.msra.mxu0 0
        %738 = vmatprep.subr.bf16.mxu0 0
        %739 = vmatpush1.bf16.msra.mxu0 0
        %740 = vmatprep.subr.bf16.mxu0 0
        %741 = vmatpush1.bf16.msra.mxu0 0
        %742 = vmatprep.subr.bf16.mxu0 0
        %743 = vmatpush1.bf16.msra.mxu0 0
        %744 = vmatprep.subr.bf16.mxu0 0
        %745 = vmatpush1.bf16.msra.mxu0 0
        %746 = vmatprep.subr.bf16.mxu0 0
        %747 = vmatpush1.bf16.msra.mxu0 0
        %748 = vmatprep.subr.bf16.mxu0 0
        %749 = vmatpush1.bf16.msra.mxu0 %v730
        %750 = vmatprep.subr.bf16.mxu0 0
        %751 = vmatpush1.bf16.msra.mxu0 %v729
        %752 = vmatprep.subr.bf16.mxu0 0
        %753 = vmatpush2.bf16.msra.mxu0 0
        %754 = vmatprep.subr.bf16.mxu0 0
        %755 = vmatpush2.bf16.msra.mxu0 0
        %756 = vmatprep.subr.bf16.mxu0 0
        %757 = vmatpush2.bf16.msra.mxu0 0
        %758 = vmatprep.subr.bf16.mxu0 0
        %759 = vmatpush2.bf16.msra.mxu0 0
        %760 = vmatprep.subr.bf16.mxu0 0
        %761 = vmatpush2.bf16.msra.mxu0 0
        %762 = vmatprep.subr.bf16.mxu0 0
        %763 = vmatpush2.bf16.msra.mxu0 0
        %764 = vmatprep.subr.bf16.mxu0 0
        %765 = vmatpush2.bf16.msra.mxu0 0
        %766 = vmatprep.subr.bf16.mxu0 0
        %767 = vmatpush2.bf16.msra.mxu0 0
        %768 = vmatprep.mubr.bf16.mxu0 0
        %769 = vmatmul.mubr.bf16.gmra.mxu0 %v734
        %v770 = vpop.f32.mrf.mxu0
        %v771 = vadd.f32 0.0, %v770
        %v772 = vpop.f32.mrf.mxu0
        %v773 = vpop.f32.mrf.mxu0
        %v774 = vpop.f32.mrf.mxu0
        %775 = vdwg.mxu0
        %v776 = vmul.f32 %v771, 0.35355338
        %v777 = vpack.c.bf16 %v776, %v776
        %779 = vrot.lane.b32.xlu0 %v777, 120
        %v780 = vpop.permute.xlu0 %779
        %781 = vrot.lane.b32.xlu0 %v777, 112
        %v782 = vpop.permute.xlu0 %781
        %783 = vrot.lane.b32.xlu0 %v777, 104
        %v784 = vpop.permute.xlu0 %783
        %v785 = vpack.c.bf16 %v771, %v771
        %787 = vrot.lane.b32.xlu0 %v785, 120
        %v788 = vpop.permute.xlu0 %787
        %789 = vrot.lane.b32.xlu0 %v785, 112
        %v790 = vpop.permute.xlu0 %789
        %791 = vrot.lane.b32.xlu0 %v785, 104
        %v792 = vpop.permute.xlu0 %791
        %793 = vrot.lane.b32.xlu0 %v785, 96
        %v794 = vpop.permute.xlu0 %793
        %vm795 = vcmask 64512
        %v797 = vsel %vm795, %v777, 0
        %v800 = vsel %vm795, %v794, 0
        %802 = vmatprep.subr.bf16.mxu0 0
        %803 = vmatpush1.bf16.xpose.msra.mxu0 0
        %804 = vmatprep.subr.bf16.mxu0 0
        %805 = vmatpush1.bf16.xpose.msra.mxu0 0
        %806 = vmatprep.subr.bf16.mxu0 0
        %807 = vmatpush1.bf16.xpose.msra.mxu0 0
        %808 = vmatprep.subr.bf16.mxu0 0
        %809 = vmatpush1.bf16.xpose.msra.mxu0 0
        %810 = vmatprep.subr.bf16.mxu0 0
        %811 = vmatpush1.bf16.xpose.msra.mxu0 0
        %812 = vmatprep.subr.bf16.mxu0 0
        %813 = vmatpush1.bf16.xpose.msra.mxu0 0
        %814 = vmatprep.subr.bf16.mxu0 0
        %815 = vmatpush1.bf16.xpose.msra.mxu0 0
        %816 = vmatprep.subr.bf16.mxu0 0
        %817 = vmatpush1.bf16.xpose.msra.mxu0 %v800
        %818 = vmatprep.subr.bf16.mxu0 0
        %819 = vmatpush2.bf16.xpose.msra.mxu0 0
        %820 = vmatprep.subr.bf16.mxu0 0
        %821 = vmatpush2.bf16.xpose.msra.mxu0 0
        %822 = vmatprep.subr.bf16.mxu0 0
        %823 = vmatpush2.bf16.xpose.msra.mxu0 0
        %824 = vmatprep.subr.bf16.mxu0 0
        %825 = vmatpush2.bf16.xpose.msra.mxu0 0
        %826 = vmatprep.subr.bf16.mxu0 0
        %827 = vmatpush2.bf16.xpose.msra.mxu0 0
        %828 = vmatprep.subr.bf16.mxu0 0
        %829 = vmatpush2.bf16.xpose.msra.mxu0 0
        %830 = vmatprep.subr.bf16.mxu0 0
        %831 = vmatpush2.bf16.xpose.msra.mxu0 0
        %832 = vmatprep.subr.bf16.mxu0 0
        %833 = vmatpush2.bf16.xpose.msra.mxu0 0
        %834 = vmatprep.mubr.bf16.mxu0 0
        %835 = vmatmul.mubr.bf16.gmra.mxu0 %v797
        %v836 = vpop.f32.mrf.mxu0
        %v837 = vadd.f32 0.0, %v836
        %v838 = vpop.f32.mrf.mxu0
        %v839 = vpop.f32.mrf.mxu0
        %v840 = vpop.f32.mrf.mxu0
        %841 = vdwg.mxu0
        %842 = vrot.lane.b32.xlu0 %v788, 96
        %v843 = vpop.permute.xlu0 %842
        %v845 = vsel %vm795, %v780, 0
        %v848 = vsel %vm795, %v843, 0
        %850 = vmatprep.subr.bf16.mxu0 0
        %851 = vmatpush1.bf16.xpose.msra.mxu0 0
        %852 = vmatprep.subr.bf16.mxu0 0
        %853 = vmatpush1.bf16.xpose.msra.mxu0 0
        %854 = vmatprep.subr.bf16.mxu0 0
        %855 = vmatpush1.bf16.xpose.msra.mxu0 0
        %856 = vmatprep.subr.bf16.mxu0 0
        %857 = vmatpush1.bf16.xpose.msra.mxu0 0
        %858 = vmatprep.subr.bf16.mxu0 0
        %859 = vmatpush1.bf16.xpose.msra.mxu0 0
        %860 = vmatprep.subr.bf16.mxu0 0
        %861 = vmatpush1.bf16.xpose.msra.mxu0 0
        %862 = vmatprep.subr.bf16.mxu0 0
        %863 = vmatpush1.bf16.xpose.msra.mxu0 0
        %864 = vmatprep.subr.bf16.mxu0 0
        %865 = vmatpush1.bf16.xpose.msra.mxu0 %v848
        %866 = vmatprep.subr.bf16.mxu0 0
        %867 = vmatpush2.bf16.xpose.msra.mxu0 0
        %868 = vmatprep.subr.bf16.mxu0 0
        %869 = vmatpush2.bf16.xpose.msra.mxu0 0
        %870 = vmatprep.subr.bf16.mxu0 0
        %871 = vmatpush2.bf16.xpose.msra.mxu0 0
        %872 = vmatprep.subr.bf16.mxu0 0
        %873 = vmatpush2.bf16.xpose.msra.mxu0 0
        %874 = vmatprep.subr.bf16.mxu0 0
        %875 = vmatpush2.bf16.xpose.msra.mxu0 0
        %876 = vmatprep.subr.bf16.mxu0 0
        %877 = vmatpush2.bf16.xpose.msra.mxu0 0
        %878 = vmatprep.subr.bf16.mxu0 0
        %879 = vmatpush2.bf16.xpose.msra.mxu0 0
        %880 = vmatprep.subr.bf16.mxu0 0
        %881 = vmatpush2.bf16.xpose.msra.mxu0 0
        %882 = vmatprep.mubr.bf16.mxu0 0
        %883 = vmatmul.mubr.bf16.gmra.mxu0 %v845
        %v884 = vpop.f32.mrf.mxu0
        %v885 = vadd.f32 0.0, %v884
        %v886 = vpop.f32.mrf.mxu0
        %v887 = vpop.f32.mrf.mxu0
        %v888 = vpop.f32.mrf.mxu0
        %889 = vdwg.mxu0
        %890 = vrot.lane.b32.xlu0 %v790, 96
        %v891 = vpop.permute.xlu0 %890
        %v893 = vsel %vm795, %v782, 0
        %v896 = vsel %vm795, %v891, 0
        %898 = vmatprep.subr.bf16.mxu0 0
        %899 = vmatpush1.bf16.xpose.msra.mxu0 0
        %900 = vmatprep.subr.bf16.mxu0 0
        %901 = vmatpush1.bf16.xpose.msra.mxu0 0
        %902 = vmatprep.subr.bf16.mxu0 0
        %903 = vmatpush1.bf16.xpose.msra.mxu0 0
        %904 = vmatprep.subr.bf16.mxu0 0
        %905 = vmatpush1.bf16.xpose.msra.mxu0 0
        %906 = vmatprep.subr.bf16.mxu0 0
        %907 = vmatpush1.bf16.xpose.msra.mxu0 0
        %908 = vmatprep.subr.bf16.mxu0 0
        %909 = vmatpush1.bf16.xpose.msra.mxu0 0
        %910 = vmatprep.subr.bf16.mxu0 0
        %911 = vmatpush1.bf16.xpose.msra.mxu0 0
        %912 = vmatprep.subr.bf16.mxu0 0
        %913 = vmatpush1.bf16.xpose.msra.mxu0 %v896
        %914 = vmatprep.subr.bf16.mxu0 0
        %915 = vmatpush2.bf16.xpose.msra.mxu0 0
        %916 = vmatprep.subr.bf16.mxu0 0
        %917 = vmatpush2.bf16.xpose.msra.mxu0 0
        %918 = vmatprep.subr.bf16.mxu0 0
        %919 = vmatpush2.bf16.xpose.msra.mxu0 0
        %920 = vmatprep.subr.bf16.mxu0 0
        %921 = vmatpush2.bf16.xpose.msra.mxu0 0
        %922 = vmatprep.subr.bf16.mxu0 0
        %923 = vmatpush2.bf16.xpose.msra.mxu0 0
        %924 = vmatprep.subr.bf16.mxu0 0
        %925 = vmatpush2.bf16.xpose.msra.mxu0 0
        %926 = vmatprep.subr.bf16.mxu0 0
        %927 = vmatpush2.bf16.xpose.msra.mxu0 0
        %928 = vmatprep.subr.bf16.mxu0 0
        %929 = vmatpush2.bf16.xpose.msra.mxu0 0
        %930 = vmatprep.mubr.bf16.mxu0 0
        %931 = vmatmul.mubr.bf16.gmra.mxu0 %v893
        %v932 = vpop.f32.mrf.mxu0
        %v933 = vadd.f32 0.0, %v932
        %v934 = vpop.f32.mrf.mxu0
        %v935 = vpop.f32.mrf.mxu0
        %v936 = vpop.f32.mrf.mxu0
        %937 = vdwg.mxu0
        %938 = vrot.lane.b32.xlu0 %v792, 96
        %v939 = vpop.permute.xlu0 %938
        %v941 = vsel %vm795, %v784, 0
        %v944 = vsel %vm795, %v939, 0
        %946 = vmatprep.subr.bf16.mxu0 0
        %947 = vmatpush1.bf16.xpose.msra.mxu0 0
        %948 = vmatprep.subr.bf16.mxu0 0
        %949 = vmatpush1.bf16.xpose.msra.mxu0 0
        %950 = vmatprep.subr.bf16.mxu0 0
        %951 = vmatpush1.bf16.xpose.msra.mxu0 0
        %952 = vmatprep.subr.bf16.mxu0 0
        %953 = vmatpush1.bf16.xpose.msra.mxu0 0
        %954 = vmatprep.subr.bf16.mxu0 0
        %955 = vmatpush1.bf16.xpose.msra.mxu0 0
        %956 = vmatprep.subr.bf16.mxu0 0
        %957 = vmatpush1.bf16.xpose.msra.mxu0 0
        %958 = vmatprep.subr.bf16.mxu0 0
        %959 = vmatpush1.bf16.xpose.msra.mxu0 0
        %960 = vmatprep.subr.bf16.mxu0 0
        %961 = vmatpush1.bf16.xpose.msra.mxu0 %v944
        %962 = vmatprep.subr.bf16.mxu0 0
        %963 = vmatpush2.bf16.xpose.msra.mxu0 0
        %964 = vmatprep.subr.bf16.mxu0 0
        %965 = vmatpush2.bf16.xpose.msra.mxu0 0
        %966 = vmatprep.subr.bf16.mxu0 0
        %967 = vmatpush2.bf16.xpose.msra.mxu0 0
        %968 = vmatprep.subr.bf16.mxu0 0
        %969 = vmatpush2.bf16.xpose.msra.mxu0 0
        %970 = vmatprep.subr.bf16.mxu0 0
        %971 = vmatpush2.bf16.xpose.msra.mxu0 0
        %972 = vmatprep.subr.bf16.mxu0 0
        %973 = vmatpush2.bf16.xpose.msra.mxu0 0
        %974 = vmatprep.subr.bf16.mxu0 0
        %975 = vmatpush2.bf16.xpose.msra.mxu0 0
        %976 = vmatprep.subr.bf16.mxu0 0
        %977 = vmatpush2.bf16.xpose.msra.mxu0 0
        %978 = vmatprep.mubr.bf16.mxu0 0
        %979 = vmatmul.mubr.bf16.gmra.mxu0 %v941
        %v980 = vpop.f32.mrf.mxu0
        %v981 = vadd.f32 0.0, %v980
        %v982 = vpop.f32.mrf.mxu0
        %v983 = vpop.f32.mrf.mxu0
        %v984 = vpop.f32.mrf.mxu0
        %985 = vdwg.mxu0
        %v986 = vsel %vm795, %v837, -inf
        %987 = vmax.xlane.f32.xlu0 %v986
        %v988 = vpop.xlane.xlu0 %987
        %v989 = vsel %vm795, %v885, -inf
        %990 = vmax.xlane.f32.xlu0 %v989
        %v991 = vpop.xlane.xlu0 %990
        %v992 = vsel %vm795, %v933, -inf
        %993 = vmax.xlane.f32.xlu0 %v992
        %v994 = vpop.xlane.xlu0 %993
        %v995 = vsel %vm795, %v981, -inf
        %996 = vmax.xlane.f32.xlu0 %v995
        %v997 = vpop.xlane.xlu0 %996
        %v998 = vsub.f32 %v837, %v988
        %v999 = vsub.f32 %v885, %v991
        %v1000 = vsub.f32 %v933, %v994
        %v1001 = vsub.f32 %v981, %v997
        %v1002 = vmul.f32 %v998, 1.442695
        %v1003 = vpow.pop %v1002
        %v1004 = vmul.f32 %v999, 1.442695
        %v1005 = vpow.pop %v1004
        %v1006 = vmul.f32 %v1000, 1.442695
        %v1007 = vpow.pop %v1006
        %v1008 = vmul.f32 %v1001, 1.442695
        %v1009 = vpow.pop %v1008
        %v1010 = vsel %vm795, %v1003, 0.0
        %1011 = vadd.xlane.f32.xlu0 %v1010
        %v1012 = vpop.xlane.xlu0 %1011
        %v1013 = vsel %vm795, %v1005, 0.0
        %1014 = vadd.xlane.f32.xlu0 %v1013
        %v1015 = vpop.xlane.xlu0 %1014
        %v1016 = vsel %vm795, %v1007, 0.0
        %1017 = vadd.xlane.f32.xlu0 %v1016
        %v1018 = vpop.xlane.xlu0 %1017
        %v1019 = vsel %vm795, %v1009, 0.0
        %1020 = vadd.xlane.f32.xlu0 %v1019
        %v1021 = vpop.xlane.xlu0 %1020
        %v1022 = vrcp.pop %v1012
        %v1023 = vrcp.pop %v1015
        %v1024 = vrcp.pop %v1018
        %v1025 = vrcp.pop %v1021
        %v1026 = vmul.f32 %v1003, %v1022
        %v1027 = vmul.f32 %v1005, %v1023
        %v1028 = vmul.f32 %v1007, %v1024
        %v1029 = vmul.f32 %v1009, %v1025
        %v1030 = vpack.c.bf16 %v1026, %v1026
        %v1031 = vpack.c.bf16 %v1027, %v1027
        %v1032 = vpack.c.bf16 %v1028, %v1028
        %v1033 = vpack.c.bf16 %v1029, %v1029
        %1034 = vrot.lane.b32.xlu0 %v785, 64
        %v1035 = vpop.permute.xlu0 %1034
        %v1037 = vsel %vm795, %v1030, 0
        %vm1039 = vcmask 1043456
        %v1041 = vsel %vm1039, %v1035, 0
        %1043 = vmatprep.subr.bf16.mxu0 0
        %1044 = vmatpush1.bf16.msra.mxu0 0
        %1045 = vmatprep.subr.bf16.mxu0 0
        %1046 = vmatpush1.bf16.msra.mxu0 0
        %1047 = vmatprep.subr.bf16.mxu0 0
        %1048 = vmatpush1.bf16.msra.mxu0 0
        %1049 = vmatprep.subr.bf16.mxu0 0
        %1050 = vmatpush1.bf16.msra.mxu0 0
        %1051 = vmatprep.subr.bf16.mxu0 0
        %1052 = vmatpush1.bf16.msra.mxu0 0
        %1053 = vmatprep.subr.bf16.mxu0 0
        %1054 = vmatpush1.bf16.msra.mxu0 0
        %1055 = vmatprep.subr.bf16.mxu0 0
        %1056 = vmatpush1.bf16.msra.mxu0 0
        %1057 = vmatprep.subr.bf16.mxu0 0
        %1058 = vmatpush1.bf16.msra.mxu0 %v1041
        %1059 = vmatprep.subr.bf16.mxu0 0
        %1060 = vmatpush2.bf16.msra.mxu0 0
        %1061 = vmatprep.subr.bf16.mxu0 0
        %1062 = vmatpush2.bf16.msra.mxu0 0
        %1063 = vmatprep.subr.bf16.mxu0 0
        %1064 = vmatpush2.bf16.msra.mxu0 0
        %1065 = vmatprep.subr.bf16.mxu0 0
        %1066 = vmatpush2.bf16.msra.mxu0 0
        %1067 = vmatprep.subr.bf16.mxu0 0
        %1068 = vmatpush2.bf16.msra.mxu0 0
        %1069 = vmatprep.subr.bf16.mxu0 0
        %1070 = vmatpush2.bf16.msra.mxu0 0
        %1071 = vmatprep.subr.bf16.mxu0 0
        %1072 = vmatpush2.bf16.msra.mxu0 0
        %1073 = vmatprep.subr.bf16.mxu0 0
        %1074 = vmatpush2.bf16.msra.mxu0 0
        %1075 = vmatprep.mubr.bf16.mxu0 0
        %1076 = vmatmul.mubr.bf16.gmra.mxu0 %v1037
        %v1077 = vpop.f32.mrf.mxu0
        %v1078 = vadd.f32 0.0, %v1077
        %v1079 = vpop.f32.mrf.mxu0
        %v1080 = vpop.f32.mrf.mxu0
        %v1081 = vpop.f32.mrf.mxu0
        %1082 = vdwg.mxu0
        %1083 = vrot.lane.b32.xlu0 %v788, 64
        %v1084 = vpop.permute.xlu0 %1083
        %v1086 = vsel %vm795, %v1031, 0
        %v1089 = vsel %vm1039, %v1084, 0
        %1091 = vmatprep.subr.bf16.mxu0 0
        %1092 = vmatpush1.bf16.msra.mxu0 0
        %1093 = vmatprep.subr.bf16.mxu0 0
        %1094 = vmatpush1.bf16.msra.mxu0 0
        %1095 = vmatprep.subr.bf16.mxu0 0
        %1096 = vmatpush1.bf16.msra.mxu0 0
        %1097 = vmatprep.subr.bf16.mxu0 0
        %1098 = vmatpush1.bf16.msra.mxu0 0
        %1099 = vmatprep.subr.bf16.mxu0 0
        %1100 = vmatpush1.bf16.msra.mxu0 0
        %1101 = vmatprep.subr.bf16.mxu0 0
        %1102 = vmatpush1.bf16.msra.mxu0 0
        %1103 = vmatprep.subr.bf16.mxu0 0
        %1104 = vmatpush1.bf16.msra.mxu0 0
        %1105 = vmatprep.subr.bf16.mxu0 0
        %1106 = vmatpush1.bf16.msra.mxu0 %v1089
        %1107 = vmatprep.subr.bf16.mxu0 0
        %1108 = vmatpush2.bf16.msra.mxu0 0
        %1109 = vmatprep.subr.bf16.mxu0 0
        %1110 = vmatpush2.bf16.msra.mxu0 0
        %1111 = vmatprep.subr.bf16.mxu0 0
        %1112 = vmatpush2.bf16.msra.mxu0 0
        %1113 = vmatprep.subr.bf16.mxu0 0
        %1114 = vmatpush2.bf16.msra.mxu0 0
        %1115 = vmatprep.subr.bf16.mxu0 0
        %1116 = vmatpush2.bf16.msra.mxu0 0
        %1117 = vmatprep.subr.bf16.mxu0 0
        %1118 = vmatpush2.bf16.msra.mxu0 0
        %1119 = vmatprep.subr.bf16.mxu0 0
        %1120 = vmatpush2.bf16.msra.mxu0 0
        %1121 = vmatprep.subr.bf16.mxu0 0
        %1122 = vmatpush2.bf16.msra.mxu0 0
        %1123 = vmatprep.mubr.bf16.mxu0 0
        %1124 = vmatmul.mubr.bf16.gmra.mxu0 %v1086
        %v1125 = vpop.f32.mrf.mxu0
        %v1126 = vadd.f32 0.0, %v1125
        %v1127 = vpop.f32.mrf.mxu0
        %v1128 = vpop.f32.mrf.mxu0
        %v1129 = vpop.f32.mrf.mxu0
        %1130 = vdwg.mxu0
        %1131 = vrot.lane.b32.xlu0 %v790, 64
        %v1132 = vpop.permute.xlu0 %1131
        %v1134 = vsel %vm795, %v1032, 0
        %v1137 = vsel %vm1039, %v1132, 0
        %1139 = vmatprep.subr.bf16.mxu0 0
        %1140 = vmatpush1.bf16.msra.mxu0 0
        %1141 = vmatprep.subr.bf16.mxu0 0
        %1142 = vmatpush1.bf16.msra.mxu0 0
        %1143 = vmatprep.subr.bf16.mxu0 0
        %1144 = vmatpush1.bf16.msra.mxu0 0
        %1145 = vmatprep.subr.bf16.mxu0 0
        %1146 = vmatpush1.bf16.msra.mxu0 0
        %1147 = vmatprep.subr.bf16.mxu0 0
        %1148 = vmatpush1.bf16.msra.mxu0 0
        %1149 = vmatprep.subr.bf16.mxu0 0
        %1150 = vmatpush1.bf16.msra.mxu0 0
        %1151 = vmatprep.subr.bf16.mxu0 0
        %1152 = vmatpush1.bf16.msra.mxu0 0
        %1153 = vmatprep.subr.bf16.mxu0 0
        %1154 = vmatpush1.bf16.msra.mxu0 %v1137
        %1155 = vmatprep.subr.bf16.mxu0 0
        %1156 = vmatpush2.bf16.msra.mxu0 0
        %1157 = vmatprep.subr.bf16.mxu0 0
        %1158 = vmatpush2.bf16.msra.mxu0 0
        %1159 = vmatprep.subr.bf16.mxu0 0
        %1160 = vmatpush2.bf16.msra.mxu0 0
        %1161 = vmatprep.subr.bf16.mxu0 0
        %1162 = vmatpush2.bf16.msra.mxu0 0
        %1163 = vmatprep.subr.bf16.mxu0 0
        %1164 = vmatpush2.bf16.msra.mxu0 0
        %1165 = vmatprep.subr.bf16.mxu0 0
        %1166 = vmatpush2.bf16.msra.mxu0 0
        %1167 = vmatprep.subr.bf16.mxu0 0
        %1168 = vmatpush2.bf16.msra.mxu0 0
        %1169 = vmatprep.subr.bf16.mxu0 0
        %1170 = vmatpush2.bf16.msra.mxu0 0
        %1171 = vmatprep.mubr.bf16.mxu0 0
        %1172 = vmatmul.mubr.bf16.gmra.mxu0 %v1134
        %v1173 = vpop.f32.mrf.mxu0
        %v1174 = vadd.f32 0.0, %v1173
        %v1175 = vpop.f32.mrf.mxu0
        %v1176 = vpop.f32.mrf.mxu0
        %v1177 = vpop.f32.mrf.mxu0
        %1178 = vdwg.mxu0
        %1179 = vrot.lane.b32.xlu0 %v792, 64
        %v1180 = vpop.permute.xlu0 %1179
        %v1182 = vsel %vm795, %v1033, 0
        %v1185 = vsel %vm1039, %v1180, 0
        %1187 = vmatprep.subr.bf16.mxu0 0
        %1188 = vmatpush1.bf16.msra.mxu0 0
        %1189 = vmatprep.subr.bf16.mxu0 0
        %1190 = vmatpush1.bf16.msra.mxu0 0
        %1191 = vmatprep.subr.bf16.mxu0 0
        %1192 = vmatpush1.bf16.msra.mxu0 0
        %1193 = vmatprep.subr.bf16.mxu0 0
        %1194 = vmatpush1.bf16.msra.mxu0 0
        %1195 = vmatprep.subr.bf16.mxu0 0
        %1196 = vmatpush1.bf16.msra.mxu0 0
        %1197 = vmatprep.subr.bf16.mxu0 0
        %1198 = vmatpush1.bf16.msra.mxu0 0
        %1199 = vmatprep.subr.bf16.mxu0 0
        %1200 = vmatpush1.bf16.msra.mxu0 0
        %1201 = vmatprep.subr.bf16.mxu0 0
        %1202 = vmatpush1.bf16.msra.mxu0 %v1185
        %1203 = vmatprep.subr.bf16.mxu0 0
        %1204 = vmatpush2.bf16.msra.mxu0 0
        %1205 = vmatprep.subr.bf16.mxu0 0
        %1206 = vmatpush2.bf16.msra.mxu0 0
        %1207 = vmatprep.subr.bf16.mxu0 0
        %1208 = vmatpush2.bf16.msra.mxu0 0
        %1209 = vmatprep.subr.bf16.mxu0 0
        %1210 = vmatpush2.bf16.msra.mxu0 0
        %1211 = vmatprep.subr.bf16.mxu0 0
        %1212 = vmatpush2.bf16.msra.mxu0 0
        %1213 = vmatprep.subr.bf16.mxu0 0
        %1214 = vmatpush2.bf16.msra.mxu0 0
        %1215 = vmatprep.subr.bf16.mxu0 0
        %1216 = vmatpush2.bf16.msra.mxu0 0
        %1217 = vmatprep.subr.bf16.mxu0 0
        %1218 = vmatpush2.bf16.msra.mxu0 0
        %1219 = vmatprep.mubr.bf16.mxu0 0
        %1220 = vmatmul.mubr.bf16.gmra.mxu0 %v1182
        %v1221 = vpop.f32.mrf.mxu0
        %v1222 = vadd.f32 0.0, %v1221
        %v1223 = vpop.f32.mrf.mxu0
        %v1224 = vpop.f32.mrf.mxu0
        %v1225 = vpop.f32.mrf.mxu0
        %1226 = vdwg.mxu0
        %1228 = vrot.lane.b32.xlu0 %v1126, 8
        %v1229 = vpop.permute.xlu0 %1228
        %1232 = vrot.lane.b32.xlu0 %v1174, 16
        %v1233 = vpop.permute.xlu0 %1232
        %1236 = vrot.lane.b32.xlu0 %v1222, 24
        %v1237 = vpop.permute.xlu0 %1236
        %v1239 = vsel %vm795, %v1078, %v1229
        %vm1240 = vcmask 130048
        %v1241 = vsel %vm1240, %v1239, %v1233
        %vm1242 = vcmask 195584
        %v1243 = vsel %vm1242, %v1241, %v1237
        %v1244 = vpack.c.bf16 %v1243, %v1243
        %v1245 = vld [vmem:[%s656] sm:$0xf]
        %v1246 = vld [vmem:[%s656 + $0x4] sm:$0xf]
        %v1247 = vld [vmem:[%s656 + $0x8] sm:$0xf]
        %v1248 = vld [vmem:[%s656 + $0xc] sm:$0xf]
        %v1253 = vunpack.c.l.b16 %v1245
        %v1254 = vunpack.c.l.b16 %v1246
        %v1255 = vunpack.c.l.b16 %v1247
        %v1256 = vunpack.c.l.b16 %v1248
        %v1257 = vpack.c.b16 %v1254, %v1253
        %v1258 = vpack.c.b16 %v1256, %v1255
        %v1262 = vsel %vm687, %v1244, 0
        %1264 = vmatprep.subr.bf16.mxu0 0
        %1265 = vmatpush1.bf16.msra.mxu0 0
        %1266 = vmatprep.subr.bf16.mxu0 0
        %1267 = vmatpush1.bf16.msra.mxu0 0
        %1268 = vmatprep.subr.bf16.mxu0 0
        %1269 = vmatpush1.bf16.msra.mxu0 0
        %1270 = vmatprep.subr.bf16.mxu0 0
        %1271 = vmatpush1.bf16.msra.mxu0 0
        %1272 = vmatprep.subr.bf16.mxu0 0
        %1273 = vmatpush1.bf16.msra.mxu0 0
        %1274 = vmatprep.subr.bf16.mxu0 0
        %1275 = vmatpush1.bf16.msra.mxu0 0
        %1276 = vmatprep.subr.bf16.mxu0 0
        %1277 = vmatpush1.bf16.msra.mxu0 %v1258
        %1278 = vmatprep.subr.bf16.mxu0 0
        %1279 = vmatpush1.bf16.msra.mxu0 %v1257
        %1280 = vmatprep.subr.bf16.mxu0 0
        %1281 = vmatpush2.bf16.msra.mxu0 0
        %1282 = vmatprep.subr.bf16.mxu0 0
        %1283 = vmatpush2.bf16.msra.mxu0 0
        %1284 = vmatprep.subr.bf16.mxu0 0
        %1285 = vmatpush2.bf16.msra.mxu0 0
        %1286 = vmatprep.subr.bf16.mxu0 0
        %1287 = vmatpush2.bf16.msra.mxu0 0
        %1288 = vmatprep.subr.bf16.mxu0 0
        %1289 = vmatpush2.bf16.msra.mxu0 0
        %1290 = vmatprep.subr.bf16.mxu0 0
        %1291 = vmatpush2.bf16.msra.mxu0 0
        %1292 = vmatprep.subr.bf16.mxu0 0
        %1293 = vmatpush2.bf16.msra.mxu0 0
        %1294 = vmatprep.subr.bf16.mxu0 0
        %1295 = vmatpush2.bf16.msra.mxu0 0
        %1296 = vmatprep.mubr.bf16.mxu0 0
        %1297 = vmatmul.mubr.bf16.gmra.mxu0 %v1262
        %v1298 = vpop.f32.mrf.mxu0
        %v1299 = vadd.f32 0.0, %v1298
        %v1300 = vpop.f32.mrf.mxu0
        %v1301 = vpop.f32.mrf.mxu0
        %v1302 = vpop.f32.mrf.mxu0
        %1303 = vdwg.mxu0
        %v1304 = vadd.f32 %v684, %v1299
        %v1305 = vld [vmem:[%s659] sm:$0x1]
        %v1307 = vlaneseq
        %v1308 = vshrl.u32 %v1307, 7
        %v1309 = vsub.s32 0, %v1308
        %v1310 = vrot.slane %v1305, %v1309
        %v1312 = vadd.f32 %v1304, %v1310
        %v1313 = vld [vmem:[%s662] sm:$0x1]
        %v1314 = vld [vmem:[%s665] sm:$0x1]
        %v1315 = vsel %vm687, %v1312, 0.0
        %1316 = vadd.xlane.f32.xlu0 %v1315
        %v1317 = vpop.xlane.xlu0 %1316
        %v1318 = vmul.f32 %v1317, %v691
        %v1319 = vsub.f32 %v1312, %v1318
        %v1320 = vmul.f32 %v1319, %v1319
        %v1321 = vsel %vm687, %v1320, 0.0
        %1322 = vadd.xlane.f32.xlu0 %v1321
        %v1323 = vpop.xlane.xlu0 %1322
        %v1324 = vmul.f32 %v1323, %v691
        %v1325 = vadd.f32 %v1324, 1e-05
        %v1326 = vrsqrt.pop %v1325
        %v1327 = vmul.f32 %v1319, %v1326
        %v1329 = vlaneseq
        %v1330 = vshrl.u32 %v1329, 7
        %v1331 = vsub.s32 0, %v1330
        %v1332 = vrot.slane %v1313, %v1331
        %v1334 = vmul.f32 %v1327, %v1332
        %v1336 = vlaneseq
        %v1337 = vshrl.u32 %v1336, 7
        %v1338 = vsub.s32 0, %v1337
        %v1339 = vrot.slane %v1314, %v1338
        %v1341 = vadd.f32 %v1334, %v1339
        %v1342 = vpack.c.bf16 %v1341, %v1341
        %v1343 = vld [vmem:[%s670] sm:$0xf]
        %v1344 = vld [vmem:[%s670 + $0x4] sm:$0xf]
        %v1345 = vld [vmem:[%s670 + $0x8] sm:$0xf]
        %v1346 = vld [vmem:[%s670 + $0xc] sm:$0xf]
        %v1347 = vld [vmem:[%s551] sm:$0x1]
        %v1349 = vlaneseq
        %v1350 = vshrl.u32 %v1349, 7
        %v1351 = vsub.s32 0, %v1350
        %v1352 = vrot.slane %v1347, %v1351
        %v1358 = vunpack.c.l.b16 %v1343
        %v1359 = vunpack.c.l.b16 %v1344
        %v1360 = vunpack.c.l.b16 %v1345
        %v1361 = vunpack.c.l.b16 %v1346
        %v1362 = vpack.c.b16 %v1359, %v1358
        %v1363 = vpack.c.b16 %v1361, %v1360
        %v1367 = vsel %vm687, %v1342, 0
        %1369 = vmatprep.subr.bf16.mxu0 0
        %1370 = vmatpush1.bf16.msra.mxu0 0
        %1371 = vmatprep.subr.bf16.mxu0 0
        %1372 = vmatpush1.bf16.msra.mxu0 0
        %1373 = vmatprep.subr.bf16.mxu0 0
        %1374 = vmatpush1.bf16.msra.mxu0 0
        %1375 = vmatprep.subr.bf16.mxu0 0
        %1376 = vmatpush1.bf16.msra.mxu0 0
        %1377 = vmatprep.subr.bf16.mxu0 0
        %1378 = vmatpush1.bf16.msra.mxu0 0
        %1379 = vmatprep.subr.bf16.mxu0 0
        %1380 = vmatpush1.bf16.msra.mxu0 0
        %1381 = vmatprep.subr.bf16.mxu0 0
        %1382 = vmatpush1.bf16.msra.mxu0 %v1363
        %1383 = vmatprep.subr.bf16.mxu0 0
        %1384 = vmatpush1.bf16.msra.mxu0 %v1362
        %1385 = vmatprep.subr.bf16.mxu0 0
        %1386 = vmatpush2.bf16.msra.mxu0 0
        %1387 = vmatprep.subr.bf16.mxu0 0
        %1388 = vmatpush2.bf16.msra.mxu0 0
        %1389 = vmatprep.subr.bf16.mxu0 0
        %1390 = vmatpush2.bf16.msra.mxu0 0
        %1391 = vmatprep.subr.bf16.mxu0 0
        %1392 = vmatpush2.bf16.msra.mxu0 0
        %1393 = vmatprep.subr.bf16.mxu0 0
        %1394 = vmatpush2.bf16.msra.mxu0 0
        %1395 = vmatprep.subr.bf16.mxu0 0
        %1396 = vmatpush2.bf16.msra.mxu0 0
        %1397 = vmatprep.subr.bf16.mxu0 0
        %1398 = vmatpush2.bf16.msra.mxu0 0
        %1399 = vmatprep.subr.bf16.mxu0 0
        %1400 = vmatpush2.bf16.msra.mxu0 0
        %1401 = vmatprep.mubr.bf16.mxu0 0
        %1402 = vmatmul.mubr.bf16.gmra.mxu0 %v1367
        %v1403 = vpop.f32.mrf.mxu0
        %v1404 = vadd.f32 %v1352, %v1403
        %v1405 = vpop.f32.mrf.mxu0
        %v1406 = vpop.f32.mrf.mxu0
        %v1407 = vpop.f32.mrf.mxu0
        %1408 = vdwg.mxu0
        %v1409 = vmul.f32 %v1404, 0.5
        %v1410 = vmul.f32 %v1404, 0.044715
        %v1411 = vmul.f32 %v1410, %v1404
        %v1412 = vmul.f32 %v1411, %v1404
        %v1413 = vadd.f32 %v1404, %v1412
        %v1414 = vmul.f32 %v1413, 0.7978846
        %v1415 = vtanh.pop %v1414
        %v1416 = vadd.f32 %v1415, 1.0
        %v1417 = vmul.f32 %v1409, %v1416
        %v1418 = vpack.c.bf16 %v1417, %v1417
        %v1419 = vld [vmem:[%s675] sm:$0xf]
        %v1420 = vld [vmem:[%s675 + $0x4] sm:$0xf]
        %v1421 = vld [vmem:[%s675 + $0x8] sm:$0xf]
        %v1422 = vld [vmem:[%s675 + $0xc] sm:$0xf]
        %v1423 = vld [vmem:[%s675 + $0x10] sm:$0xf]
        %v1424 = vld [vmem:[%s675 + $0x14] sm:$0xf]
        %v1425 = vld [vmem:[%s675 + $0x18] sm:$0xf]
        %v1426 = vld [vmem:[%s675 + $0x1c] sm:$0xf]
        %v1427 = vld [vmem:[%s559] sm:$0x1]
        %v1429 = vlaneseq
        %v1430 = vshrl.u32 %v1429, 7
        %v1431 = vsub.s32 0, %v1430
        %v1432 = vrot.slane %v1427, %v1431
        %v1442 = vunpack.c.l.b16 %v1419
        %v1443 = vunpack.c.l.b16 %v1420
        %v1444 = vunpack.c.l.b16 %v1421
        %v1445 = vunpack.c.l.b16 %v1422
        %v1446 = vunpack.c.l.b16 %v1423
        %v1447 = vunpack.c.l.b16 %v1424
        %v1448 = vunpack.c.l.b16 %v1425
        %v1449 = vunpack.c.l.b16 %v1426
        %v1450 = vpack.c.b16 %v1443, %v1442
        %v1451 = vpack.c.b16 %v1445, %v1444
        %v1452 = vpack.c.b16 %v1447, %v1446
        %v1453 = vpack.c.b16 %v1449, %v1448
        %vm1458 = vcmask 523264
        %v1460 = vsel %vm1458, %v1418, 0
        %1462 = vmatprep.subr.bf16.mxu0 0
        %1463 = vmatpush1.bf16.msra.mxu0 0
        %1464 = vmatprep.subr.bf16.mxu0 0
        %1465 = vmatpush1.bf16.msra.mxu0 0
        %1466 = vmatprep.subr.bf16.mxu0 0
        %1467 = vmatpush1.bf16.msra.mxu0 0
        %1468 = vmatprep.subr.bf16.mxu0 0
        %1469 = vmatpush1.bf16.msra.mxu0 0
        %1470 = vmatprep.subr.bf16.mxu0 0
        %1471 = vmatpush1.bf16.msra.mxu0 %v1453
        %1472 = vmatprep.subr.bf16.mxu0 0
        %1473 = vmatpush1.bf16.msra.mxu0 %v1452
        %1474 = vmatprep.subr.bf16.mxu0 0
        %1475 = vmatpush1.bf16.msra.mxu0 %v1451
        %1476 = vmatprep.subr.bf16.mxu0 0
        %1477 = vmatpush1.bf16.msra.mxu0 %v1450
        %1478 = vmatprep.subr.bf16.mxu0 0
        %1479 = vmatpush2.bf16.msra.mxu0 0
        %1480 = vmatprep.subr.bf16.mxu0 0
        %1481 = vmatpush2.bf16.msra.mxu0 0
        %1482 = vmatprep.subr.bf16.mxu0 0
        %1483 = vmatpush2.bf16.msra.mxu0 0
        %1484 = vmatprep.subr.bf16.mxu0 0
        %1485 = vmatpush2.bf16.msra.mxu0 0
        %1486 = vmatprep.subr.bf16.mxu0 0
        %1487 = vmatpush2.bf16.msra.mxu0 0
        %1488 = vmatprep.subr.bf16.mxu0 0
        %1489 = vmatpush2.bf16.msra.mxu0 0
        %1490 = vmatprep.subr.bf16.mxu0 0
        %1491 = vmatpush2.bf16.msra.mxu0 0
        %1492 = vmatprep.subr.bf16.mxu0 0
        %1493 = vmatpush2.bf16.msra.mxu0 0
        %1494 = vmatprep.mubr.bf16.mxu0 0
        %1495 = vmatmul.mubr.bf16.gmra.mxu0 %v1460
        %v1496 = vpop.f32.mrf.mxu0
        %v1497 = vadd.f32 %v1432, %v1496
        %v1498 = vpop.f32.mrf.mxu0
        %v1499 = vpop.f32.mrf.mxu0
        %v1500 = vpop.f32.mrf.mxu0
        %1501 = vdwg.mxu0
        %v1502 = vadd.f32 %v1312, %v1497
        %1503 = vst.msk [vmem:[%s643] sm:$0xff] %vm687, %v1502
        %s1504 = sand.u32 %s367, 1
        %s1505 = scalar_lea.sflag [#allocation4], %s1504
        %s1506 = sand.u32 %s367, 1
        %s1507 = smul.addr %s1506, 8
        %s1508 = scalar_lea.vmem [#allocation10], %s1507
        // Predicated region
        $region89: #{transformer_forward.1} parent=67 // pred_check
          %p1509 = pneg %p377
        $region90: #{transformer_forward.1} parent=67 // pred_check_branch
          %1511 = sbr.rel (%p1509) target = $region92
        $region91: #{transformer_forward.1} parent=67 // pred_region
          %s1513 = ssub.s32 128, 128
          %1514 = vsyncadd %s1505, %s1513
          %s1515 = smul.addr %s39, 128
          %s1516 = scalar_lea.hbm %s12, %s1515
          %s1518 = sshll.u32 %s1508, 4
          %s1519 = int_to_ptr.vmem [resolvable:$true] %s1518
          %1521 = dma.vmem_to_hbm [thread:$0]  %s1519, 128, %s1516, %s1505
        $region92: #{transformer_forward.1} parent=67 // pred_fallthru
          _
      $region68: #{transformer_forward.1} parent=5 // pred_fallthru
        _
      %p1522 = scmp.le.s32.totalorder 2, %s30
      // Predicated region
      $region93: #{transformer_forward.1} parent=5 // pred_check
        %p1523 = pneg %p1522
      $region94: #{transformer_forward.1} parent=5 // pred_check_branch
        %1525 = sbr.rel (%p1523) target = $region96
      $region95: #{transformer_forward.1} parent=5 // pred_region
        %s1526 = ssub.s32 %s30, 2
        // Predicated region
        $region97: #{transformer_forward.1} parent=95 // pred_check
          %p1527 = pneg %p383
        $region98: #{transformer_forward.1} parent=95 // pred_check_branch
          %1529 = sbr.rel (%p1527) target = $region100
        $region99: #{transformer_forward.1} parent=95 // pred_region
          %s1530 = sand.u32 %s368, 1
          %s1531 = scalar_lea.sflag [#allocation4], %s1530
          %s1532 = sand.u32 %s368, 1
          %s1533 = smul.addr %s1532, 8
          %s1534 = scalar_lea.vmem [#allocation10], %s1533
          %1535 = dma.done %s1531, 128
        $region100: #{transformer_forward.1} parent=95 // pred_fallthru
          _
      $region96: #{transformer_forward.1} parent=5 // pred_fallthru
        _
    $region6: #{transformer_forward.1} parent=1 // loop_footer
      %s34 = sadd.s32 1, %s30
    $region7: #{transformer_forward.1} parent=1 // loop_footer_branch
      %29 = sbr.rel target = $region3
    $region8: #{transformer_forward.1} parent=1 // loop_exit
      _
    %1536 = vsyncpa [#allocation3], 1
    %s1537 = scalar_lea.sflag [#allocation3], 1
    %1538 = vsyncpa %s1537, 1
    %1539 = vsyncpa [#allocation6], 1
    %s1540 = scalar_lea.sflag [#allocation6], 1
    %1541 = vsyncpa %s1540, 1
    %1542 = vsyncpa [#allocation9], 1
    %s1543 = scalar_lea.sflag [#allocation9], 1
    %1544 = vsyncpa %s1543, 1
    %1545 = vsyncpa [#allocation4], 1
    %s1546 = scalar_lea.sflag [#allocation4], 1
    %1547 = vsyncpa %s1546, 1

</llo_original>
